<compile_context>
chip_gen: v7x
topology: tpu7x:2x2x1
jax: 0.10.0
libtpu: 0.0.40
codegen_flags: <defaults>
</compile_context>

<pallas_src>
import functools

import jax
import jax.numpy as jnp
import numpy as np
from jax import lax
from jax.experimental import pallas as pl
from jax.experimental.pallas import tpu as pltpu


def _round_up(x, m):
    return ((x + m - 1) // m) * m


def _cdiv(a, b):
    return -(-a // b)


def _make_rvq_kernel(num_levels, num_clusters, sub_rows, num_chunks):
    """Builds a kernel specialized for static (L, K, SUB, NCHUNK)."""
    L, K, SUB = num_levels, num_clusters, sub_rows

    def kernel(x_ref, c_ref, c2h_ref, q_ref, idx_ref):
        """One grid step processes a (TM, D) tile of feature rows.

        x_ref:   (TM, D)    f32   input features tile
        c_ref:   (L, K, D)  f32   all codebooks (resident every step)
        c2h_ref: (L, K)     f32   precomputed 0.5*||center||^2 per level
        q_ref:   (TM, D)    f32   sum of per-level quantized vectors
        idx_ref: (L, TM)    i32   chosen cluster index per level (lane-dense)
        """
        # Hoisted once per grid step (not per sub-chunk / level).
        centers = [c_ref[l] for l in range(L)]              # each (K, D)
        c2half = [c2h_ref[l][None, :] for l in range(L)]    # each (1, K)
        k_iota = lax.broadcasted_iota(jnp.int32, (SUB, K), 1)
        dnums = (((1,), (1,)), ((), ()))  # contract feature dim of both sides

        def chunk(ci, carry):
            row0 = pl.multiple_of(ci * SUB, SUB)
            r = x_ref[pl.ds(row0, SUB), :].astype(jnp.float32)   # (SUB, D)
            acc = jnp.zeros_like(r)
            for level in range(L):            # static unroll, L is small
                c = centers[level]
                cross = lax.dot_general(
                    r, c, dimension_numbers=dnums,
                    preferred_element_type=jnp.float32)           # (SUB, K)
                # argmin of squared L2 distance: 0.5*||c||^2 - r.c
                # (per-row ||r||^2 and the factor 2 dropped -> same argmin and
                #  first-minimum tie-breaks as torch.cdist(...).argmin()).
                s = c2half[level] - cross
                smin = jnp.min(s, axis=-1, keepdims=True)
                idx = jnp.min(jnp.where(s == smin, k_iota, K), axis=-1)  # i32
                # gather centers[idx] as a one-hot matmul (MXU-friendly)
                onehot = (k_iota == idx[:, None]).astype(jnp.float32)
                q = jnp.dot(onehot, c, preferred_element_type=jnp.float32)
                acc = acc + q
                r = r - q
                idx_ref[level, pl.ds(row0, SUB)] = idx   # lane-dense store
            q_ref[pl.ds(row0, SUB), :] = acc.astype(q_ref.dtype)
            return carry

        lax.fori_loop(0, num_chunks, chunk, 0, unroll=True)

    return kernel


@functools.partial(jax.jit, static_argnames=("tm",))
def rvq_forward_pallas(features, quantizers, tm=1024):
    """features: (N, D) f32; quantizers: (L, K, D) f32.

    Returns (quantized (N, D) f32, indices (L, N) int32).
    """
    N, D = features.shape
    L, K, _ = quantizers.shape
    features = features.astype(jnp.float32)
    quantizers = quantizers.astype(jnp.float32)

    # Pad rows only to a multiple of 128, then derive the tile from a target
    # step count (>= 2 and even when possible -> both v7x TCs get work) instead
    # of padding N up to a multiple of a fixed large tile.
    n_pad128 = _round_up(max(N, 1), 128)
    max_steps = n_pad128 // 128
    steps = min(max(_cdiv(n_pad128, tm), 2), max_steps)
    if steps % 2 == 1 and steps < max_steps:
        steps += 1
    tm_eff = _round_up(_cdiv(n_pad128, steps), 128)
    steps = _cdiv(n_pad128, tm_eff)
    n_pad = steps * tm_eff

    if n_pad != N:
        features = jnp.pad(features, ((0, n_pad - N), (0, 0)))

    # Inner sub-chunk keeps live temporaries / vregs bounded so the DMA tile
    # (tm_eff) can grow without spilling. Must divide tm_eff and be 128-aligned.
    sub = next(s for s in (512, 384, 256, 128) if tm_eff % s == 0)
    num_chunks = tm_eff // sub

    # Hoisted once per call (outside the kernel): 0.5*||center||^2 per level.
    c2half = 0.5 * jnp.sum(quantizers * quantizers, axis=-1)   # (L, K)

    kernel = _make_rvq_kernel(L, K, sub, num_chunks)

    quantized, idx_lN = pl.pallas_call(
        kernel,
        out_shape=(
            jax.ShapeDtypeStruct((n_pad, D), jnp.float32),
            jax.ShapeDtypeStruct((L, n_pad), jnp.int32),   # lane-dense indices
        ),
        grid_spec=pltpu.PrefetchScalarGridSpec(
            num_scalar_prefetch=0,
            grid=(steps,),
            in_specs=[
                pl.BlockSpec((tm_eff, D), lambda i: (i, 0)),    # feature rows
                pl.BlockSpec((L, K, D), lambda i: (0, 0, 0)),   # codebooks
                pl.BlockSpec((L, K), lambda i: (0, 0)),         # 0.5*||c||^2
            ],
            out_specs=[
                pl.BlockSpec((tm_eff, D), lambda i: (i, 0)),
                pl.BlockSpec((L, tm_eff), lambda i: (0, i)),
            ],
        ),
        compiler_params=pltpu.CompilerParams(dimension_semantics=("parallel",)),
    )(features, quantizers, c2half)

    return quantized[:N], idx_lN[:, :N]


def rvq_forward(features, quantizers, tm=1024):
    """Mirrors the PyTorch forward: returns (quantized_result, list_of_index_vectors)."""
    quantized, idx_lN = rvq_forward_pallas(features, quantizers, tm=tm)
    L = quantizers.shape[0]
    return quantized, [idx_lN[l] for l in range(L)]


def _rvq_reference(features, quantizers):
    """Pure-JAX reference of the PyTorch forward (for verification)."""
    residuals = features
    acc = jnp.zeros_like(features)
    idx_list = []
    for level in range(quantizers.shape[0]):
        c = quantizers[level]
        d = jnp.sqrt(
            jnp.maximum(
                jnp.sum(residuals**2, -1, keepdims=True)
                - 2.0 * residuals @ c.T
                + jnp.sum(c**2, -1)[None, :],
                0.0,
            )
        )
        idx = jnp.argmin(d, axis=-1).astype(jnp.int32)
        q = c[idx]
        acc = acc + q
        residuals = residuals - q
        idx_list.append(idx)
    return acc, idx_list


def _check(features, quantizers, tm):
    q, idx = rvq_forward(features, quantizers, tm=tm)
    q = jax.block_until_ready(q)
    idx = [jax.block_until_ready(i) for i in idx]
    ref_q, ref_idx = _rvq_reference(features, quantizers)
    np.testing.assert_allclose(np.asarray(q), np.asarray(ref_q), rtol=1e-5, atol=1e-5)
    for a, b in zip(idx, ref_idx):
        np.testing.assert_array_equal(np.asarray(a), np.asarray(b))


if __name__ == "__main__":
    # Small, deterministic synthetic setup consistent with the module:
    #   num_levels L = 3, num_clusters K = 16, feature_dim D = 32.
    D, K, L = 32, 16, 3
    key = jax.random.PRNGKey(0)
    k_feat, k_cent, k_feat2, k_feat3 = jax.random.split(key, 4)

    # Deterministic stand-in for k-means codebooks (fit_quantizers is training-time
    # scikit-learn clustering; forward only needs the center tensors).
    # TODO(synk): MiniBatchKMeans fitting itself has no Pallas equivalent; only forward is implemented.
    quantizers = 0.5 * jax.random.normal(k_cent, (L, K, D), dtype=jnp.float32)

    # Case 1: tiny N (single 128-row tile, exercises the pad-to-128 path).
    _check(jax.random.normal(k_feat, (64, D), dtype=jnp.float32), quantizers, tm=1024)

    # Case 2: ragged N with a 2-step grid (pad tail + multi-step pipeline).
    _check(jax.random.normal(k_feat2, (300, D), dtype=jnp.float32), quantizers, tm=1024)

    # Case 3: larger ragged N -> even multi-step grid + multi-chunk inner loop.
    _check(jax.random.normal(k_feat3, (2500, D), dtype=jnp.float32), quantizers, tm=1024)

    print("KERNEL_OK")
</pallas_src>

<mosaic_0001>
module attributes {stable_mosaic.version = 11 : i64} {
  func.func @kernel(%arg0: i32, %arg1: memref<128x32xf32, #tpu.memory_space<vmem>>, %arg2: memref<3x16x32xf32, #tpu.memory_space<vmem>>, %arg3: memref<3x16xf32, #tpu.memory_space<vmem>>, %arg4: memref<128x32xf32, #tpu.memory_space<vmem>>, %arg5: memref<3x128xi32, #tpu.memory_space<vmem>>) attributes {dimension_semantics = [#tpu.dimension_semantics<parallel>], iteration_bounds = array<i64: 1>, scalar_prefetch = 0 : i64, scratch_operands = 0 : i64, tpu.core_type = #tpu.core_type<tc>, window_params = [{transform_indices = @transform_0, window_bounds = array<i64: 128, 32>}, {pipeline_mode = #tpu.pipeline_mode<synchronous>, transform_indices = @transform_1, window_bounds = array<i64: 3, 16, 32>}, {pipeline_mode = #tpu.pipeline_mode<synchronous>, transform_indices = @transform_2, window_bounds = array<i64: 3, 16>}, {transform_indices = @transform_3, window_bounds = array<i64: 128, 32>}, {transform_indices = @transform_4, window_bounds = array<i64: 3, 128>}]} {
    %c0 = arith.constant 0 : index
    %c0_0 = arith.constant 0 : index
    %c0_1 = arith.constant 0 : index
    %0 = vector.load %arg2[%c0, %c0_0, %c0_1] : memref<3x16x32xf32, #tpu.memory_space<vmem>>, vector<1x16x32xf32>
    %1 = vector.shape_cast %0 : vector<1x16x32xf32> to vector<16x32xf32>
    %c1 = arith.constant 1 : index
    %c0_2 = arith.constant 0 : index
    %c0_3 = arith.constant 0 : index
    %2 = vector.load %arg2[%c1, %c0_2, %c0_3] : memref<3x16x32xf32, #tpu.memory_space<vmem>>, vector<1x16x32xf32>
    %3 = vector.shape_cast %2 : vector<1x16x32xf32> to vector<16x32xf32>
    %c2 = arith.constant 2 : index
    %c0_4 = arith.constant 0 : index
    %c0_5 = arith.constant 0 : index
    %4 = vector.load %arg2[%c2, %c0_4, %c0_5] : memref<3x16x32xf32, #tpu.memory_space<vmem>>, vector<1x16x32xf32>
    %5 = vector.shape_cast %4 : vector<1x16x32xf32> to vector<16x32xf32>
    %c0_6 = arith.constant 0 : index
    %c0_7 = arith.constant 0 : index
    %6 = vector.load %arg3[%c0_6, %c0_7] : memref<3x16xf32, #tpu.memory_space<vmem>>, vector<1x16xf32>
    %7 = vector.shape_cast %6 : vector<1x16xf32> to vector<16xf32>
    %8 = vector.shape_cast %7 : vector<16xf32> to vector<1x16xf32>
    %c1_8 = arith.constant 1 : index
    %c0_9 = arith.constant 0 : index
    %9 = vector.load %arg3[%c1_8, %c0_9] : memref<3x16xf32, #tpu.memory_space<vmem>>, vector<1x16xf32>
    %10 = vector.shape_cast %9 : vector<1x16xf32> to vector<16xf32>
    %11 = vector.shape_cast %10 : vector<16xf32> to vector<1x16xf32>
    %c2_10 = arith.constant 2 : index
    %c0_11 = arith.constant 0 : index
    %12 = vector.load %arg3[%c2_10, %c0_11] : memref<3x16xf32, #tpu.memory_space<vmem>>, vector<1x16xf32>
    %13 = vector.shape_cast %12 : vector<1x16xf32> to vector<16xf32>
    %14 = vector.shape_cast %13 : vector<16xf32> to vector<1x16xf32>
    %15 = tpu.iota {dimensions = array<i32: 1>} : vector<128x16xi32>
    %c0_i32 = arith.constant 0 : i32
    %c128_i32 = arith.constant 128 : i32
    %16 = arith.muli %c0_i32, %c128_i32 : i32
    %17 = tpu.assume_multiple %16, 128 : i32
    %18 = arith.index_cast %17 : i32 to index
    %c0_12 = arith.constant 0 : index
    %19 = vector.load %arg1[%18, %c0_12] : memref<128x32xf32, #tpu.memory_space<vmem>>, vector<128x32xf32>
    %cst = arith.constant 0.000000e+00 : f32
    %20 = vector.broadcast %cst : f32 to vector<128x32xf32>
    %cst_13 = arith.constant dense<0.000000e+00> : vector<128x16xf32>
    %21 = tpu.matmul %19, %1, %cst_13 {dimension_numbers = #tpu.dot_dimension_numbers<[1], [1], [0], [0], [0, 0, 1, 0], [], []>} : vector<128x32xf32>, vector<16x32xf32>, vector<128x16xf32> -> vector<128x16xf32>
    %22 = vector.broadcast %8 : vector<1x16xf32> to vector<128x16xf32>
    %23 = arith.subf %22, %21 : vector<128x16xf32>
    %cst_14 = arith.constant dense<0x7F800000> : vector<128xf32>
    %24 = vector.multi_reduction <minimumf>, %23, %cst_14 [1] : vector<128x16xf32> to vector<128xf32>
    %25 = vector.shape_cast %24 : vector<128xf32> to vector<128x1xf32>
    %26 = vector.broadcast %25 : vector<128x1xf32> to vector<128x16xf32>
    %27 = arith.cmpf oeq, %23, %26 : vector<128x16xf32>
    %c16_i32 = arith.constant 16 : i32
    %28 = vector.broadcast %c16_i32 : i32 to vector<128x16xi32>
    %29 = arith.select %27, %15, %28 : vector<128x16xi1>, vector<128x16xi32>
    %cst_15 = arith.constant dense<2147483647> : vector<128xi32>
    %30 = vector.multi_reduction <minsi>, %29, %cst_15 [1] : vector<128x16xi32> to vector<128xi32>
    %31 = vector.shape_cast %30 : vector<128xi32> to vector<128x1xi32>
    %32 = vector.broadcast %31 : vector<128x1xi32> to vector<128x16xi32>
    %33 = arith.cmpi eq, %15, %32 : vector<128x16xi32>
    %34 = arith.extui %33 : vector<128x16xi1> to vector<128x16xi32>
    %35 = arith.sitofp %34 : vector<128x16xi32> to vector<128x16xf32>
    %cst_16 = arith.constant dense<0.000000e+00> : vector<128x32xf32>
    %36 = tpu.matmul %35, %1, %cst_16 {dimension_numbers = #tpu.dot_dimension_numbers<[1], [0], [0], [1], [0, 0, 1, 1], [], []>} : vector<128x16xf32>, vector<16x32xf32>, vector<128x32xf32> -> vector<128x32xf32>
    %37 = arith.addf %20, %36 : vector<128x32xf32>
    %38 = arith.subf %19, %36 : vector<128x32xf32>
    %c0_17 = arith.constant 0 : index
    %39 = arith.index_cast %17 : i32 to index
    %40 = vector.load %arg5[%c0_17, %39] : memref<3x128xi32, #tpu.memory_space<vmem>>, vector<1x128xi32>
    %41 = vector.shape_cast %40 : vector<1x128xi32> to vector<128xi32>
    %42 = vector.shape_cast %30 : vector<128xi32> to vector<1x128xi32>
    tpu.vector_store %arg5[%c0_17, %39], %42 {strides = array<i32>} : memref<3x128xi32, #tpu.memory_space<vmem>>, vector<1x128xi32>,
    %cst_18 = arith.constant dense<0.000000e+00> : vector<128x16xf32>
    %43 = tpu.matmul %38, %3, %cst_18 {dimension_numbers = #tpu.dot_dimension_numbers<[1], [1], [0], [0], [0, 0, 1, 0], [], []>} : vector<128x32xf32>, vector<16x32xf32>, vector<128x16xf32> -> vector<128x16xf32>
    %44 = vector.broadcast %11 : vector<1x16xf32> to vector<128x16xf32>
    %45 = arith.subf %44, %43 : vector<128x16xf32>
    %cst_19 = arith.constant dense<0x7F800000> : vector<128xf32>
    %46 = vector.multi_reduction <minimumf>, %45, %cst_19 [1] : vector<128x16xf32> to vector<128xf32>
    %47 = vector.shape_cast %46 : vector<128xf32> to vector<128x1xf32>
    %48 = vector.broadcast %47 : vector<128x1xf32> to vector<128x16xf32>
    %49 = arith.cmpf oeq, %45, %48 : vector<128x16xf32>
    %c16_i32_20 = arith.constant 16 : i32
    %50 = vector.broadcast %c16_i32_20 : i32 to vector<128x16xi32>
    %51 = arith.select %49, %15, %50 : vector<128x16xi1>, vector<128x16xi32>
    %cst_21 = arith.constant dense<2147483647> : vector<128xi32>
    %52 = vector.multi_reduction <minsi>, %51, %cst_21 [1] : vector<128x16xi32> to vector<128xi32>
    %53 = vector.shape_cast %52 : vector<128xi32> to vector<128x1xi32>
    %54 = vector.broadcast %53 : vector<128x1xi32> to vector<128x16xi32>
    %55 = arith.cmpi eq, %15, %54 : vector<128x16xi32>
    %56 = arith.extui %55 : vector<128x16xi1> to vector<128x16xi32>
    %57 = arith.sitofp %56 : vector<128x16xi32> to vector<128x16xf32>
    %cst_22 = arith.constant dense<0.000000e+00> : vector<128x32xf32>
    %58 = tpu.matmul %57, %3, %cst_22 {dimension_numbers = #tpu.dot_dimension_numbers<[1], [0], [0], [1], [0, 0, 1, 1], [], []>} : vector<128x16xf32>, vector<16x32xf32>, vector<128x32xf32> -> vector<128x32xf32>
    %59 = arith.addf %37, %58 : vector<128x32xf32>
    %60 = arith.subf %38, %58 : vector<128x32xf32>
    %c1_23 = arith.constant 1 : index
    %61 = arith.index_cast %17 : i32 to index
    %62 = vector.load %arg5[%c1_23, %61] : memref<3x128xi32, #tpu.memory_space<vmem>>, vector<1x128xi32>
    %63 = vector.shape_cast %62 : vector<1x128xi32> to vector<128xi32>
    %64 = vector.shape_cast %52 : vector<128xi32> to vector<1x128xi32>
    tpu.vector_store %arg5[%c1_23, %61], %64 {strides = array<i32>} : memref<3x128xi32, #tpu.memory_space<vmem>>, vector<1x128xi32>,
    %cst_24 = arith.constant dense<0.000000e+00> : vector<128x16xf32>
    %65 = tpu.matmul %60, %5, %cst_24 {dimension_numbers = #tpu.dot_dimension_numbers<[1], [1], [0], [0], [0, 0, 1, 0], [], []>} : vector<128x32xf32>, vector<16x32xf32>, vector<128x16xf32> -> vector<128x16xf32>
    %66 = vector.broadcast %14 : vector<1x16xf32> to vector<128x16xf32>
    %67 = arith.subf %66, %65 : vector<128x16xf32>
    %cst_25 = arith.constant dense<0x7F800000> : vector<128xf32>
    %68 = vector.multi_reduction <minimumf>, %67, %cst_25 [1] : vector<128x16xf32> to vector<128xf32>
    %69 = vector.shape_cast %68 : vector<128xf32> to vector<128x1xf32>
    %70 = vector.broadcast %69 : vector<128x1xf32> to vector<128x16xf32>
    %71 = arith.cmpf oeq, %67, %70 : vector<128x16xf32>
    %c16_i32_26 = arith.constant 16 : i32
    %72 = vector.broadcast %c16_i32_26 : i32 to vector<128x16xi32>
    %73 = arith.select %71, %15, %72 : vector<128x16xi1>, vector<128x16xi32>
    %cst_27 = arith.constant dense<2147483647> : vector<128xi32>
    %74 = vector.multi_reduction <minsi>, %73, %cst_27 [1] : vector<128x16xi32> to vector<128xi32>
    %75 = vector.shape_cast %74 : vector<128xi32> to vector<128x1xi32>
    %76 = vector.broadcast %75 : vector<128x1xi32> to vector<128x16xi32>
    %77 = arith.cmpi eq, %15, %76 : vector<128x16xi32>
    %78 = arith.extui %77 : vector<128x16xi1> to vector<128x16xi32>
    %79 = arith.sitofp %78 : vector<128x16xi32> to vector<128x16xf32>
    %cst_28 = arith.constant dense<0.000000e+00> : vector<128x32xf32>
    %80 = tpu.matmul %79, %5, %cst_28 {dimension_numbers = #tpu.dot_dimension_numbers<[1], [0], [0], [1], [0, 0, 1, 1], [], []>} : vector<128x16xf32>, vector<16x32xf32>, vector<128x32xf32> -> vector<128x32xf32>
    %81 = arith.addf %59, %80 : vector<128x32xf32>
    %c2_29 = arith.constant 2 : index
    %82 = arith.index_cast %17 : i32 to index
    %83 = vector.load %arg5[%c2_29, %82] : memref<3x128xi32, #tpu.memory_space<vmem>>, vector<1x128xi32>
    %84 = vector.shape_cast %83 : vector<1x128xi32> to vector<128xi32>
    %85 = vector.shape_cast %74 : vector<128xi32> to vector<1x128xi32>
    tpu.vector_store %arg5[%c2_29, %82], %85 {strides = array<i32>} : memref<3x128xi32, #tpu.memory_space<vmem>>, vector<1x128xi32>,
    %86 = arith.index_cast %17 : i32 to index
    %c0_30 = arith.constant 0 : index
    %87 = vector.load %arg4[%86, %c0_30] : memref<128x32xf32, #tpu.memory_space<vmem>>, vector<128x32xf32>
    tpu.vector_store %arg4[%86, %c0_30], %81 {strides = array<i32>} : memref<128x32xf32, #tpu.memory_space<vmem>>, vector<128x32xf32>,
    %c1_i32 = arith.constant 1 : i32
    return
  }
  func.func @transform_0(%arg0: i32) -> (i32, i32) {
    %c0_i32 = arith.constant 0 : i32
    %c0_i32_0 = arith.constant 0 : i32
    return %arg0, %c0_i32 : i32, i32
  }
  func.func @transform_1(%arg0: i32) -> (i32, i32, i32) {
    %c0_i32 = arith.constant 0 : i32
    %c0_i32_0 = arith.constant 0 : i32
    %c0_i32_1 = arith.constant 0 : i32
    %c0_i32_2 = arith.constant 0 : i32
    return %c0_i32, %c0_i32_0, %c0_i32_1 : i32, i32, i32
  }
  func.func @transform_2(%arg0: i32) -> (i32, i32) {
    %c0_i32 = arith.constant 0 : i32
    %c0_i32_0 = arith.constant 0 : i32
    %c0_i32_1 = arith.constant 0 : i32
    return %c0_i32, %c0_i32_0 : i32, i32
  }
  func.func @transform_3(%arg0: i32) -> (i32, i32) {
    %c0_i32 = arith.constant 0 : i32
    %c0_i32_0 = arith.constant 0 : i32
    return %arg0, %c0_i32 : i32, i32
  }
  func.func @transform_4(%arg0: i32) -> (i32, i32) {
    %c0_i32 = arith.constant 0 : i32
    %c0_i32_0 = arith.constant 0 : i32
    return %c0_i32, %arg0 : i32, i32
  }
}

</mosaic_0001>

<llo_original>
// kernel: rvq_forward_pallas.1
$region0: #{rvq_forward_pallas.1}
  #allocation0 [shape = 'u32[]', space=smem, size = 0x4, offset = 0x4, fixed_abs, tag = 'smem constant byte address 0x4 - core index']
  #allocation1 [shape = 'u32[144,128]{1,0:T(1,128)}', space=vmem, size = 0x12000, scoped, tag = 'internal scratch']
  %s0 = inlined_call_operand.vmem [shape: f32[128,32], index: 0, kind: input, shape index: {}]
  %s1 = inlined_call_operand.vmem [shape: f32[3,16,32], index: 1, kind: input, shape index: {}]
  %s2 = inlined_call_operand.vmem [shape: f32[3,16], index: 2, kind: input, shape index: {}]
  %s3 = inlined_call_operand.vmem [shape: f32[128,32], index: 3, kind: output, shape index: {0}]
  %s4 = inlined_call_operand.hbm [shape: s32[3,128], index: 4, kind: output, shape index: {1}]
  %5 = xla_tuple %s3, %s4
  %s6 = sld [smem:[#allocation0]]
  $region30: #{rvq_forward_pallas.1} parent=0
    _
  %s8 = ssub.s32 1, %s6
  %s9 = scalar_select 0, %s8, %s6
  $region1: #{rvq_forward_pallas.1} parent=0
    #allocation2 [shape = 'u8[2048]{0}', space=vmem, size = 0x800, scoped, tag = 'output window, operand 1, single buffered']
    #allocation3 [shape = 's32[1]{0}', space=sflag, size = 0x4, scoped, tag = 'scoped memory for rvq_forward_pallas.1']
    %10 = vsyncpa [#allocation3], 0
    // Predicated region
    $region2: #{rvq_forward_pallas.1} parent=1 // pred_check
      _
    $region3: #{rvq_forward_pallas.1} parent=1 // pred_check_branch
      %12 = sbr.rel (0) target = $region5
    $region4: #{rvq_forward_pallas.1} parent=1 // pred_region
      _
    $region5: #{rvq_forward_pallas.1} parent=1 // pred_fallthru
      _
    // Predicated region
    $region6: #{rvq_forward_pallas.1} parent=1 // pred_check
      _
    $region7: #{rvq_forward_pallas.1} parent=1 // pred_check_branch
      %14 = sbr.rel (0) target = $region9
    $region8: #{rvq_forward_pallas.1} parent=1 // pred_region
      _
    $region9: #{rvq_forward_pallas.1} parent=1 // pred_fallthru
      _
    // Predicated region
    $region10: #{rvq_forward_pallas.1} parent=1 // pred_check
      _
    $region11: #{rvq_forward_pallas.1} parent=1 // pred_check_branch
      %16 = sbr.rel (0) target = $region13
    $region12: #{rvq_forward_pallas.1} parent=1 // pred_region
      _
    $region13: #{rvq_forward_pallas.1} parent=1 // pred_fallthru
      _
    %v17 = vld [vmem:[%s1] sm:$0xff]
    %v18 = vld [vmem:[%s1 + $0x8] sm:$0xff]
    %s19 = scalar_lea.vmem %s1, 16
    %v20 = vld [vmem:[%s19] sm:$0xff]
    %v21 = vld [vmem:[%s19 + $0x8] sm:$0xff]
    %s22 = scalar_lea.vmem %s1, 32
    %v23 = vld [vmem:[%s22] sm:$0xff]
    %v24 = vld [vmem:[%s22 + $0x8] sm:$0xff]
    %v25 = vld [vmem:[%s2] sm:$0x1]
    %v26 = vld [vmem:[%s2 + $0x1] sm:$0x1]
    %v27 = vld [vmem:[%s2 + $0x2] sm:$0x1]
    %v28 = vlaneseq
    %v29 = vand.u32 %v28, 127
    %v30 = vld [vmem:[%s0] sm:$0xff]
    %v31 = vld [vmem:[%s0 + $0x8] sm:$0xff]
    %v32 = vld [vmem:[%s0 + $0x10] sm:$0xff]
    %v33 = vld [vmem:[%s0 + $0x18] sm:$0xff]
    %v34 = vld [vmem:[%s0 + $0x20] sm:$0xff]
    %v35 = vld [vmem:[%s0 + $0x28] sm:$0xff]
    %v36 = vld [vmem:[%s0 + $0x30] sm:$0xff]
    %v37 = vld [vmem:[%s0 + $0x38] sm:$0xff]
    %v38 = vld [vmem:[%s0 + $0x40] sm:$0xff]
    %v39 = vld [vmem:[%s0 + $0x48] sm:$0xff]
    %v40 = vld [vmem:[%s0 + $0x50] sm:$0xff]
    %v41 = vld [vmem:[%s0 + $0x58] sm:$0xff]
    %v42 = vld [vmem:[%s0 + $0x60] sm:$0xff]
    %v43 = vld [vmem:[%s0 + $0x68] sm:$0xff]
    %v44 = vld [vmem:[%s0 + $0x70] sm:$0xff]
    %v45 = vld [vmem:[%s0 + $0x78] sm:$0xff]
    %vm46 = vcmask 261120
    %v48 = vsel %vm46, %v30, 0
    %v51 = vsel %vm46, %v31, 0
    %v54 = vsel %vm46, %v32, 0
    %v57 = vsel %vm46, %v33, 0
    %v60 = vsel %vm46, %v34, 0
    %v63 = vsel %vm46, %v35, 0
    %v66 = vsel %vm46, %v36, 0
    %v69 = vsel %vm46, %v37, 0
    %v72 = vsel %vm46, %v38, 0
    %v75 = vsel %vm46, %v39, 0
    %v78 = vsel %vm46, %v40, 0
    %v81 = vsel %vm46, %v41, 0
    %v84 = vsel %vm46, %v42, 0
    %v87 = vsel %vm46, %v43, 0
    %v90 = vsel %vm46, %v44, 0
    %v93 = vsel %vm46, %v45, 0
    %v96 = vsel %vm46, %v17, 0
    %v99 = vsel %vm46, %v18, 0
    %101 = vmatprep.subr.mxu0 0.0
    %102 = vmatpush1.xpose.msra.mxu0 %v96
    %103 = vmatprep.subr.mxu0 0.0
    %104 = vmatpush1.xpose.msra.mxu0 %v99
    %105 = vmatprep.subr.mxu0 0.0
    %106 = vmatpush1.xpose.msra.mxu0 0.0
    %107 = vmatprep.subr.mxu0 0.0
    %108 = vmatpush1.xpose.msra.mxu0 0.0
    %109 = vmatprep.subr.mxu0 0.0
    %110 = vmatpush1.xpose.msra.mxu0 0.0
    %111 = vmatprep.subr.mxu0 0.0
    %112 = vmatpush1.xpose.msra.mxu0 0.0
    %113 = vmatprep.subr.mxu0 0.0
    %114 = vmatpush1.xpose.msra.mxu0 0.0
    %115 = vmatprep.subr.mxu0 0.0
    %116 = vmatpush1.xpose.msra.mxu0 0.0
    %117 = vmatprep.subr.mxu0 0.0
    %118 = vmatpush1.xpose.msra.mxu0 0.0
    %119 = vmatprep.subr.mxu0 0.0
    %120 = vmatpush1.xpose.msra.mxu0 0.0
    %121 = vmatprep.subr.mxu0 0.0
    %122 = vmatpush1.xpose.msra.mxu0 0.0
    %123 = vmatprep.subr.mxu0 0.0
    %124 = vmatpush1.xpose.msra.mxu0 0.0
    %125 = vmatprep.subr.mxu0 0.0
    %126 = vmatpush1.xpose.msra.mxu0 0.0
    %127 = vmatprep.subr.mxu0 0.0
    %128 = vmatpush1.xpose.msra.mxu0 0.0
    %129 = vmatprep.subr.mxu0 0.0
    %130 = vmatpush1.xpose.msra.mxu0 0.0
    %131 = vmatprep.subr.mxu0 0.0
    %132 = vmatpush1.xpose.msra.mxu0 0.0
    %133 = vmatprep.subr.mxu0 0.0
    %134 = vmatpush1.xpose.msra.mxu0 0.0
    %135 = vmatprep.subr.mxu0 0.0
    %136 = vmatpush1.xpose.msra.mxu0 0.0
    %137 = vmatprep.subr.mxu0 0.0
    %138 = vmatpush1.xpose.msra.mxu0 0.0
    %139 = vmatprep.subr.mxu0 0.0
    %140 = vmatpush1.xpose.msra.mxu0 0.0
    %141 = vmatprep.subr.mxu0 0.0
    %142 = vmatpush1.xpose.msra.mxu0 0.0
    %143 = vmatprep.subr.mxu0 0.0
    %144 = vmatpush1.xpose.msra.mxu0 0.0
    %145 = vmatprep.subr.mxu0 0.0
    %146 = vmatpush1.xpose.msra.mxu0 0.0
    %147 = vmatprep.subr.mxu0 0.0
    %148 = vmatpush1.xpose.msra.mxu0 0.0
    %149 = vmatprep.subr.mxu0 0.0
    %150 = vmatpush1.xpose.msra.mxu0 0.0
    %151 = vmatprep.subr.mxu0 0.0
    %152 = vmatpush1.xpose.msra.mxu0 0.0
    %153 = vmatprep.subr.mxu0 0.0
    %154 = vmatpush1.xpose.msra.mxu0 0.0
    %155 = vmatprep.subr.mxu0 0.0
    %156 = vmatpush1.xpose.msra.mxu0 0.0
    %157 = vmatprep.subr.mxu0 0.0
    %158 = vmatpush1.xpose.msra.mxu0 0.0
    %159 = vmatprep.subr.mxu0 0.0
    %160 = vmatpush1.xpose.msra.mxu0 0.0
    %161 = vmatprep.subr.mxu0 0.0
    %162 = vmatpush1.xpose.msra.mxu0 0.0
    %163 = vmatprep.subr.mxu0 0.0
    %164 = vmatpush1.xpose.msra.mxu0 0.0
    %165 = vmatprep.mubr.f32.mxu0 0.0
    %166 = vmatmul.mubr.f32.gmra.mrb[0].mxu0 %v48
    %v167 = vpop.f32.mrb[0].mxu0
    %v168 = vadd.f32 0.0, %v167
    %v169 = vpop.f32.mrb[0].mxu0
    %170 = vmatprep.mubr.f32.mxu0 0.0
    %171 = vmatmul.mubr.f32.gmra.mrb[0].mxu0 %v51
    %v172 = vpop.f32.mrb[0].mxu0
    %v173 = vadd.f32 0.0, %v172
    %v174 = vpop.f32.mrb[0].mxu0
    %175 = vmatprep.mubr.f32.mxu0 0.0
    %176 = vmatmul.mubr.f32.gmra.mrb[0].mxu0 %v54
    %v177 = vpop.f32.mrb[0].mxu0
    %v178 = vadd.f32 0.0, %v177
    %v179 = vpop.f32.mrb[0].mxu0
    %180 = vmatprep.mubr.f32.mxu0 0.0
    %181 = vmatmul.mubr.f32.gmra.mrb[0].mxu0 %v57
    %v182 = vpop.f32.mrb[0].mxu0
    %v183 = vadd.f32 0.0, %v182
    %v184 = vpop.f32.mrb[0].mxu0
    %185 = vmatprep.mubr.f32.mxu0 0.0
    %186 = vmatmul.mubr.f32.gmra.mrb[0].mxu0 %v60
    %v187 = vpop.f32.mrb[0].mxu0
    %v188 = vadd.f32 0.0, %v187
    %v189 = vpop.f32.mrb[0].mxu0
    %190 = vmatprep.mubr.f32.mxu0 0.0
    %191 = vmatmul.mubr.f32.gmra.mrb[0].mxu0 %v63
    %v192 = vpop.f32.mrb[0].mxu0
    %v193 = vadd.f32 0.0, %v192
    %v194 = vpop.f32.mrb[0].mxu0
    %195 = vmatprep.mubr.f32.mxu0 0.0
    %196 = vmatmul.mubr.f32.gmra.mrb[0].mxu0 %v66
    %v197 = vpop.f32.mrb[0].mxu0
    %v198 = vadd.f32 0.0, %v197
    %v199 = vpop.f32.mrb[0].mxu0
    %200 = vmatprep.mubr.f32.mxu0 0.0
    %201 = vmatmul.mubr.f32.gmra.mrb[0].mxu0 %v69
    %v202 = vpop.f32.mrb[0].mxu0
    %v203 = vadd.f32 0.0, %v202
    %v204 = vpop.f32.mrb[0].mxu0
    %205 = vmatprep.mubr.f32.mxu0 0.0
    %206 = vmatmul.mubr.f32.gmra.mrb[0].mxu0 %v72
    %v207 = vpop.f32.mrb[0].mxu0
    %v208 = vadd.f32 0.0, %v207
    %v209 = vpop.f32.mrb[0].mxu0
    %210 = vmatprep.mubr.f32.mxu0 0.0
    %211 = vmatmul.mubr.f32.gmra.mrb[0].mxu0 %v75
    %v212 = vpop.f32.mrb[0].mxu0
    %v213 = vadd.f32 0.0, %v212
    %v214 = vpop.f32.mrb[0].mxu0
    %215 = vmatprep.mubr.f32.mxu0 0.0
    %216 = vmatmul.mubr.f32.gmra.mrb[0].mxu0 %v78
    %v217 = vpop.f32.mrb[0].mxu0
    %v218 = vadd.f32 0.0, %v217
    %v219 = vpop.f32.mrb[0].mxu0
    %220 = vmatprep.mubr.f32.mxu0 0.0
    %221 = vmatmul.mubr.f32.gmra.mrb[0].mxu0 %v81
    %v222 = vpop.f32.mrb[0].mxu0
    %v223 = vadd.f32 0.0, %v222
    %v224 = vpop.f32.mrb[0].mxu0
    %225 = vmatprep.mubr.f32.mxu0 0.0
    %226 = vmatmul.mubr.f32.gmra.mrb[0].mxu0 %v84
    %v227 = vpop.f32.mrb[0].mxu0
    %v228 = vadd.f32 0.0, %v227
    %v229 = vpop.f32.mrb[0].mxu0
    %230 = vmatprep.mubr.f32.mxu0 0.0
    %231 = vmatmul.mubr.f32.gmra.mrb[0].mxu0 %v87
    %v232 = vpop.f32.mrb[0].mxu0
    %v233 = vadd.f32 0.0, %v232
    %v234 = vpop.f32.mrb[0].mxu0
    %235 = vmatprep.mubr.f32.mxu0 0.0
    %236 = vmatmul.mubr.f32.gmra.mrb[0].mxu0 %v90
    %v237 = vpop.f32.mrb[0].mxu0
    %v238 = vadd.f32 0.0, %v237
    %v239 = vpop.f32.mrb[0].mxu0
    %240 = vmatprep.mubr.f32.mxu0 0.0
    %241 = vmatmul.mubr.f32.gmra.mrb[0].mxu0 %v93
    %v242 = vpop.f32.mrb[0].mxu0
    %v243 = vadd.f32 0.0, %v242
    %v244 = vpop.f32.mrb[0].mxu0
    %245 = vdwg.mxu0
    %v246 = vlaneseq
    %v247 = vshrl.u32 %v246, 7
    %v248 = vsub.s32 0, %v247
    %v249 = vrot.slane %v25, %v248
    %v250 = vsub.f32 %v249, %v168
    %v251 = vsub.f32 %v249, %v173
    %v252 = vsub.f32 %v249, %v178
    %v253 = vsub.f32 %v249, %v183
    %v254 = vsub.f32 %v249, %v188
    %v255 = vsub.f32 %v249, %v193
    %v256 = vsub.f32 %v249, %v198
    %v257 = vsub.f32 %v249, %v203
    %v258 = vsub.f32 %v249, %v208
    %v259 = vsub.f32 %v249, %v213
    %v260 = vsub.f32 %v249, %v218
    %v261 = vsub.f32 %v249, %v223
    %v262 = vsub.f32 %v249, %v228
    %v263 = vsub.f32 %v249, %v233
    %v264 = vsub.f32 %v249, %v238
    %v265 = vsub.f32 %v249, %v243
    %vm266 = vcmask 130048
    %v267 = vsel %vm266, %v250, inf
    %268 = vmin.xlane.f32.xlu0 %v267
    %v269 = vpop.xlane.xlu0 %268
    %v270 = vsel %vm266, %v251, inf
    %271 = vmin.xlane.f32.xlu0 %v270
    %v272 = vpop.xlane.xlu0 %271
    %v273 = vsel %vm266, %v252, inf
    %274 = vmin.xlane.f32.xlu0 %v273
    %v275 = vpop.xlane.xlu0 %274
    %v276 = vsel %vm266, %v253, inf
    %277 = vmin.xlane.f32.xlu0 %v276
    %v278 = vpop.xlane.xlu0 %277
    %v279 = vsel %vm266, %v254, inf
    %280 = vmin.xlane.f32.xlu0 %v279
    %v281 = vpop.xlane.xlu0 %280
    %v282 = vsel %vm266, %v255, inf
    %283 = vmin.xlane.f32.xlu0 %v282
    %v284 = vpop.xlane.xlu0 %283
    %v285 = vsel %vm266, %v256, inf
    %286 = vmin.xlane.f32.xlu0 %v285
    %v287 = vpop.xlane.xlu0 %286
    %v288 = vsel %vm266, %v257, inf
    %289 = vmin.xlane.f32.xlu0 %v288
    %v290 = vpop.xlane.xlu0 %289
    %v291 = vsel %vm266, %v258, inf
    %292 = vmin.xlane.f32.xlu0 %v291
    %v293 = vpop.xlane.xlu0 %292
    %v294 = vsel %vm266, %v259, inf
    %295 = vmin.xlane.f32.xlu0 %v294
    %v296 = vpop.xlane.xlu0 %295
    %v297 = vsel %vm266, %v260, inf
    %298 = vmin.xlane.f32.xlu0 %v297
    %v299 = vpop.xlane.xlu0 %298
    %v300 = vsel %vm266, %v261, inf
    %301 = vmin.xlane.f32.xlu0 %v300
    %v302 = vpop.xlane.xlu0 %301
    %v303 = vsel %vm266, %v262, inf
    %304 = vmin.xlane.f32.xlu0 %v303
    %v305 = vpop.xlane.xlu0 %304
    %v306 = vsel %vm266, %v263, inf
    %307 = vmin.xlane.f32.xlu0 %v306
    %v308 = vpop.xlane.xlu0 %307
    %v309 = vsel %vm266, %v264, inf
    %310 = vmin.xlane.f32.xlu0 %v309
    %v311 = vpop.xlane.xlu0 %310
    %v312 = vsel %vm266, %v265, inf
    %313 = vmin.xlane.f32.xlu0 %v312
    %v314 = vpop.xlane.xlu0 %313
    %vm315 = vcmp.eq.f32.partialorder %v250, %v269
    %vm316 = vcmp.eq.f32.partialorder %v251, %v272
    %vm317 = vcmp.eq.f32.partialorder %v252, %v275
    %vm318 = vcmp.eq.f32.partialorder %v253, %v278
    %vm319 = vcmp.eq.f32.partialorder %v254, %v281
    %vm320 = vcmp.eq.f32.partialorder %v255, %v284
    %vm321 = vcmp.eq.f32.partialorder %v256, %v287
    %vm322 = vcmp.eq.f32.partialorder %v257, %v290
    %vm323 = vcmp.eq.f32.partialorder %v258, %v293
    %vm324 = vcmp.eq.f32.partialorder %v259, %v296
    %vm325 = vcmp.eq.f32.partialorder %v260, %v299
    %vm326 = vcmp.eq.f32.partialorder %v261, %v302
    %vm327 = vcmp.eq.f32.partialorder %v262, %v305
    %vm328 = vcmp.eq.f32.partialorder %v263, %v308
    %vm329 = vcmp.eq.f32.partialorder %v264, %v311
    %vm330 = vcmp.eq.f32.partialorder %v265, %v314
    %v331 = vsel %vm315, %v29, 16
    %v332 = vsel %vm316, %v29, 16
    %v333 = vsel %vm317, %v29, 16
    %v334 = vsel %vm318, %v29, 16
    %v335 = vsel %vm319, %v29, 16
    %v336 = vsel %vm320, %v29, 16
    %v337 = vsel %vm321, %v29, 16
    %v338 = vsel %vm322, %v29, 16
    %v339 = vsel %vm323, %v29, 16
    %v340 = vsel %vm324, %v29, 16
    %v341 = vsel %vm325, %v29, 16
    %v342 = vsel %vm326, %v29, 16
    %v343 = vsel %vm327, %v29, 16
    %v344 = vsel %vm328, %v29, 16
    %v345 = vsel %vm329, %v29, 16
    %v346 = vsel %vm330, %v29, 16
    %v347 = vsel %vm266, %v331, 2147483647
    %v348 = vand.u32 %v347, 65535
    %v349 = vshra.s32 %v347, 16
    %v350 = vcvt.s32.f32 %v348
    %v351 = vcvt.s32.f32 %v349
    %352 = vmin.xlane.f32.xlu0 %v351
    %v353 = vpop.xlane.xlu0 %352
    %vm354 = vcmp.eq.f32.partialorder %v351, %v353
    %v355 = vsel %vm354, %v350, inf
    %356 = vmin.xlane.f32.xlu0 %v355
    %v357 = vpop.xlane.xlu0 %356
    %v358 = vcvt.f32.s32 %v357
    %v359 = vcvt.f32.s32 %v353
    %v360 = vshll.u32 %v359, 16
    %v361 = vadd.s32 %v360, %v358
    %v362 = vsel %vm266, %v332, 2147483647
    %v363 = vand.u32 %v362, 65535
    %v364 = vshra.s32 %v362, 16
    %v365 = vcvt.s32.f32 %v363
    %v366 = vcvt.s32.f32 %v364
    %367 = vmin.xlane.f32.xlu0 %v366
    %v368 = vpop.xlane.xlu0 %367
    %vm369 = vcmp.eq.f32.partialorder %v366, %v368
    %v370 = vsel %vm369, %v365, inf
    %371 = vmin.xlane.f32.xlu0 %v370
    %v372 = vpop.xlane.xlu0 %371
    %v373 = vcvt.f32.s32 %v372
    %v374 = vcvt.f32.s32 %v368
    %v375 = vshll.u32 %v374, 16
    %v376 = vadd.s32 %v375, %v373
    %v377 = vsel %vm266, %v333, 2147483647
    %v378 = vand.u32 %v377, 65535
    %v379 = vshra.s32 %v377, 16
    %v380 = vcvt.s32.f32 %v378
    %v381 = vcvt.s32.f32 %v379
    %382 = vmin.xlane.f32.xlu0 %v381
    %v383 = vpop.xlane.xlu0 %382
    %vm384 = vcmp.eq.f32.partialorder %v381, %v383
    %v385 = vsel %vm384, %v380, inf
    %386 = vmin.xlane.f32.xlu0 %v385
    %v387 = vpop.xlane.xlu0 %386
    %v388 = vcvt.f32.s32 %v387
    %v389 = vcvt.f32.s32 %v383
    %v390 = vshll.u32 %v389, 16
    %v391 = vadd.s32 %v390, %v388
    %v392 = vsel %vm266, %v334, 2147483647
    %v393 = vand.u32 %v392, 65535
    %v394 = vshra.s32 %v392, 16
    %v395 = vcvt.s32.f32 %v393
    %v396 = vcvt.s32.f32 %v394
    %397 = vmin.xlane.f32.xlu0 %v396
    %v398 = vpop.xlane.xlu0 %397
    %vm399 = vcmp.eq.f32.partialorder %v396, %v398
    %v400 = vsel %vm399, %v395, inf
    %401 = vmin.xlane.f32.xlu0 %v400
    %v402 = vpop.xlane.xlu0 %401
    %v403 = vcvt.f32.s32 %v402
    %v404 = vcvt.f32.s32 %v398
    %v405 = vshll.u32 %v404, 16
    %v406 = vadd.s32 %v405, %v403
    %v407 = vsel %vm266, %v335, 2147483647
    %v408 = vand.u32 %v407, 65535
    %v409 = vshra.s32 %v407, 16
    %v410 = vcvt.s32.f32 %v408
    %v411 = vcvt.s32.f32 %v409
    %412 = vmin.xlane.f32.xlu0 %v411
    %v413 = vpop.xlane.xlu0 %412
    %vm414 = vcmp.eq.f32.partialorder %v411, %v413
    %v415 = vsel %vm414, %v410, inf
    %416 = vmin.xlane.f32.xlu0 %v415
    %v417 = vpop.xlane.xlu0 %416
    %v418 = vcvt.f32.s32 %v417
    %v419 = vcvt.f32.s32 %v413
    %v420 = vshll.u32 %v419, 16
    %v421 = vadd.s32 %v420, %v418
    %v422 = vsel %vm266, %v336, 2147483647
    %v423 = vand.u32 %v422, 65535
    %v424 = vshra.s32 %v422, 16
    %v425 = vcvt.s32.f32 %v423
    %v426 = vcvt.s32.f32 %v424
    %427 = vmin.xlane.f32.xlu0 %v426
    %v428 = vpop.xlane.xlu0 %427
    %vm429 = vcmp.eq.f32.partialorder %v426, %v428
    %v430 = vsel %vm429, %v425, inf
    %431 = vmin.xlane.f32.xlu0 %v430
    %v432 = vpop.xlane.xlu0 %431
    %v433 = vcvt.f32.s32 %v432
    %v434 = vcvt.f32.s32 %v428
    %v435 = vshll.u32 %v434, 16
    %v436 = vadd.s32 %v435, %v433
    %v437 = vsel %vm266, %v337, 2147483647
    %v438 = vand.u32 %v437, 65535
    %v439 = vshra.s32 %v437, 16
    %v440 = vcvt.s32.f32 %v438
    %v441 = vcvt.s32.f32 %v439
    %442 = vmin.xlane.f32.xlu0 %v441
    %v443 = vpop.xlane.xlu0 %442
    %vm444 = vcmp.eq.f32.partialorder %v441, %v443
    %v445 = vsel %vm444, %v440, inf
    %446 = vmin.xlane.f32.xlu0 %v445
    %v447 = vpop.xlane.xlu0 %446
    %v448 = vcvt.f32.s32 %v447
    %v449 = vcvt.f32.s32 %v443
    %v450 = vshll.u32 %v449, 16
    %v451 = vadd.s32 %v450, %v448
    %v452 = vsel %vm266, %v338, 2147483647
    %v453 = vand.u32 %v452, 65535
    %v454 = vshra.s32 %v452, 16
    %v455 = vcvt.s32.f32 %v453
    %v456 = vcvt.s32.f32 %v454
    %457 = vmin.xlane.f32.xlu0 %v456
    %v458 = vpop.xlane.xlu0 %457
    %vm459 = vcmp.eq.f32.partialorder %v456, %v458
    %v460 = vsel %vm459, %v455, inf
    %461 = vmin.xlane.f32.xlu0 %v460
    %v462 = vpop.xlane.xlu0 %461
    %v463 = vcvt.f32.s32 %v462
    %v464 = vcvt.f32.s32 %v458
    %v465 = vshll.u32 %v464, 16
    %v466 = vadd.s32 %v465, %v463
    %v467 = vsel %vm266, %v339, 2147483647
    %v468 = vand.u32 %v467, 65535
    %v469 = vshra.s32 %v467, 16
    %v470 = vcvt.s32.f32 %v468
    %v471 = vcvt.s32.f32 %v469
    %472 = vmin.xlane.f32.xlu0 %v471
    %v473 = vpop.xlane.xlu0 %472
    %vm474 = vcmp.eq.f32.partialorder %v471, %v473
    %v475 = vsel %vm474, %v470, inf
    %476 = vmin.xlane.f32.xlu0 %v475
    %v477 = vpop.xlane.xlu0 %476
    %v478 = vcvt.f32.s32 %v477
    %v479 = vcvt.f32.s32 %v473
    %v480 = vshll.u32 %v479, 16
    %v481 = vadd.s32 %v480, %v478
    %v482 = vsel %vm266, %v340, 2147483647
    %v483 = vand.u32 %v482, 65535
    %v484 = vshra.s32 %v482, 16
    %v485 = vcvt.s32.f32 %v483
    %v486 = vcvt.s32.f32 %v484
    %487 = vmin.xlane.f32.xlu0 %v486
    %v488 = vpop.xlane.xlu0 %487
    %vm489 = vcmp.eq.f32.partialorder %v486, %v488
    %v490 = vsel %vm489, %v485, inf
    %491 = vmin.xlane.f32.xlu0 %v490
    %v492 = vpop.xlane.xlu0 %491
    %v493 = vcvt.f32.s32 %v492
    %v494 = vcvt.f32.s32 %v488
    %v495 = vshll.u32 %v494, 16
    %v496 = vadd.s32 %v495, %v493
    %v497 = vsel %vm266, %v341, 2147483647
    %v498 = vand.u32 %v497, 65535
    %v499 = vshra.s32 %v497, 16
    %v500 = vcvt.s32.f32 %v498
    %v501 = vcvt.s32.f32 %v499
    %502 = vmin.xlane.f32.xlu0 %v501
    %v503 = vpop.xlane.xlu0 %502
    %vm504 = vcmp.eq.f32.partialorder %v501, %v503
    %v505 = vsel %vm504, %v500, inf
    %506 = vmin.xlane.f32.xlu0 %v505
    %v507 = vpop.xlane.xlu0 %506
    %v508 = vcvt.f32.s32 %v507
    %v509 = vcvt.f32.s32 %v503
    %v510 = vshll.u32 %v509, 16
    %v511 = vadd.s32 %v510, %v508
    %v512 = vsel %vm266, %v342, 2147483647
    %v513 = vand.u32 %v512, 65535
    %v514 = vshra.s32 %v512, 16
    %v515 = vcvt.s32.f32 %v513
    %v516 = vcvt.s32.f32 %v514
    %517 = vmin.xlane.f32.xlu0 %v516
    %v518 = vpop.xlane.xlu0 %517
    %vm519 = vcmp.eq.f32.partialorder %v516, %v518
    %v520 = vsel %vm519, %v515, inf
    %521 = vmin.xlane.f32.xlu0 %v520
    %v522 = vpop.xlane.xlu0 %521
    %v523 = vcvt.f32.s32 %v522
    %v524 = vcvt.f32.s32 %v518
    %v525 = vshll.u32 %v524, 16
    %v526 = vadd.s32 %v525, %v523
    %v527 = vsel %vm266, %v343, 2147483647
    %v528 = vand.u32 %v527, 65535
    %v529 = vshra.s32 %v527, 16
    %v530 = vcvt.s32.f32 %v528
    %v531 = vcvt.s32.f32 %v529
    %532 = vmin.xlane.f32.xlu0 %v531
    %v533 = vpop.xlane.xlu0 %532
    %vm534 = vcmp.eq.f32.partialorder %v531, %v533
    %v535 = vsel %vm534, %v530, inf
    %536 = vmin.xlane.f32.xlu0 %v535
    %v537 = vpop.xlane.xlu0 %536
    %v538 = vcvt.f32.s32 %v537
    %v539 = vcvt.f32.s32 %v533
    %v540 = vshll.u32 %v539, 16
    %v541 = vadd.s32 %v540, %v538
    %v542 = vsel %vm266, %v344, 2147483647
    %v543 = vand.u32 %v542, 65535
    %v544 = vshra.s32 %v542, 16
    %v545 = vcvt.s32.f32 %v543
    %v546 = vcvt.s32.f32 %v544
    %547 = vmin.xlane.f32.xlu0 %v546
    %v548 = vpop.xlane.xlu0 %547
    %vm549 = vcmp.eq.f32.partialorder %v546, %v548
    %v550 = vsel %vm549, %v545, inf
    %551 = vmin.xlane.f32.xlu0 %v550
    %v552 = vpop.xlane.xlu0 %551
    %v553 = vcvt.f32.s32 %v552
    %v554 = vcvt.f32.s32 %v548
    %v555 = vshll.u32 %v554, 16
    %v556 = vadd.s32 %v555, %v553
    %v557 = vsel %vm266, %v345, 2147483647
    %v558 = vand.u32 %v557, 65535
    %v559 = vshra.s32 %v557, 16
    %v560 = vcvt.s32.f32 %v558
    %v561 = vcvt.s32.f32 %v559
    %562 = vmin.xlane.f32.xlu0 %v561
    %v563 = vpop.xlane.xlu0 %562
    %vm564 = vcmp.eq.f32.partialorder %v561, %v563
    %v565 = vsel %vm564, %v560, inf
    %566 = vmin.xlane.f32.xlu0 %v565
    %v567 = vpop.xlane.xlu0 %566
    %v568 = vcvt.f32.s32 %v567
    %v569 = vcvt.f32.s32 %v563
    %v570 = vshll.u32 %v569, 16
    %v571 = vadd.s32 %v570, %v568
    %v572 = vsel %vm266, %v346, 2147483647
    %v573 = vand.u32 %v572, 65535
    %v574 = vshra.s32 %v572, 16
    %v575 = vcvt.s32.f32 %v573
    %v576 = vcvt.s32.f32 %v574
    %577 = vmin.xlane.f32.xlu0 %v576
    %v578 = vpop.xlane.xlu0 %577
    %vm579 = vcmp.eq.f32.partialorder %v576, %v578
    %v580 = vsel %vm579, %v575, inf
    %581 = vmin.xlane.f32.xlu0 %v580
    %v582 = vpop.xlane.xlu0 %581
    %v583 = vcvt.f32.s32 %v582
    %v584 = vcvt.f32.s32 %v578
    %v585 = vshll.u32 %v584, 16
    %v586 = vadd.s32 %v585, %v583
    %vm587 = vcmp.eq.s32.totalorder %v29, %v361
    %vm588 = vcmp.eq.s32.totalorder %v29, %v376
    %vm589 = vcmp.eq.s32.totalorder %v29, %v391
    %vm590 = vcmp.eq.s32.totalorder %v29, %v406
    %vm591 = vcmp.eq.s32.totalorder %v29, %v421
    %vm592 = vcmp.eq.s32.totalorder %v29, %v436
    %vm593 = vcmp.eq.s32.totalorder %v29, %v451
    %vm594 = vcmp.eq.s32.totalorder %v29, %v466
    %vm595 = vcmp.eq.s32.totalorder %v29, %v481
    %vm596 = vcmp.eq.s32.totalorder %v29, %v496
    %vm597 = vcmp.eq.s32.totalorder %v29, %v511
    %vm598 = vcmp.eq.s32.totalorder %v29, %v526
    %vm599 = vcmp.eq.s32.totalorder %v29, %v541
    %vm600 = vcmp.eq.s32.totalorder %v29, %v556
    %vm601 = vcmp.eq.s32.totalorder %v29, %v571
    %vm602 = vcmp.eq.s32.totalorder %v29, %v586
    %v603 = vsel %vm587, 1, 0
    %v604 = vsel %vm588, 1, 0
    %v605 = vsel %vm589, 1, 0
    %v606 = vsel %vm590, 1, 0
    %v607 = vsel %vm591, 1, 0
    %v608 = vsel %vm592, 1, 0
    %v609 = vsel %vm593, 1, 0
    %v610 = vsel %vm594, 1, 0
    %v611 = vsel %vm595, 1, 0
    %v612 = vsel %vm596, 1, 0
    %v613 = vsel %vm597, 1, 0
    %v614 = vsel %vm598, 1, 0
    %v615 = vsel %vm599, 1, 0
    %v616 = vsel %vm600, 1, 0
    %v617 = vsel %vm601, 1, 0
    %v618 = vsel %vm602, 1, 0
    %v619 = vcvt.s32.f32 %v603
    %v620 = vcvt.s32.f32 %v604
    %v621 = vcvt.s32.f32 %v605
    %v622 = vcvt.s32.f32 %v606
    %v623 = vcvt.s32.f32 %v607
    %v624 = vcvt.s32.f32 %v608
    %v625 = vcvt.s32.f32 %v609
    %v626 = vcvt.s32.f32 %v610
    %v627 = vcvt.s32.f32 %v611
    %v628 = vcvt.s32.f32 %v612
    %v629 = vcvt.s32.f32 %v613
    %v630 = vcvt.s32.f32 %v614
    %v631 = vcvt.s32.f32 %v615
    %v632 = vcvt.s32.f32 %v616
    %v633 = vcvt.s32.f32 %v617
    %v634 = vcvt.s32.f32 %v618
    %v636 = vsel %vm266, %v619, 0
    %v639 = vsel %vm266, %v620, 0
    %v642 = vsel %vm266, %v621, 0
    %v645 = vsel %vm266, %v622, 0
    %v648 = vsel %vm266, %v623, 0
    %v651 = vsel %vm266, %v624, 0
    %v654 = vsel %vm266, %v625, 0
    %v657 = vsel %vm266, %v626, 0
    %v660 = vsel %vm266, %v627, 0
    %v663 = vsel %vm266, %v628, 0
    %v666 = vsel %vm266, %v629, 0
    %v669 = vsel %vm266, %v630, 0
    %v672 = vsel %vm266, %v631, 0
    %v675 = vsel %vm266, %v632, 0
    %v678 = vsel %vm266, %v633, 0
    %v681 = vsel %vm266, %v634, 0
    %683 = vmatprep.subr.mxu0 0.0
    %684 = vmatpush1.msra.mxu0 %v17
    %685 = vmatprep.subr.mxu0 0.0
    %686 = vmatpush1.msra.mxu0 %v18
    %687 = vmatprep.subr.mxu0 0.0
    %688 = vmatpush1.msra.mxu0 0.0
    %689 = vmatprep.subr.mxu0 0.0
    %690 = vmatpush1.msra.mxu0 0.0
    %691 = vmatprep.subr.mxu0 0.0
    %692 = vmatpush1.msra.mxu0 0.0
    %693 = vmatprep.subr.mxu0 0.0
    %694 = vmatpush1.msra.mxu0 0.0
    %695 = vmatprep.subr.mxu0 0.0
    %696 = vmatpush1.msra.mxu0 0.0
    %697 = vmatprep.subr.mxu0 0.0
    %698 = vmatpush1.msra.mxu0 0.0
    %699 = vmatprep.subr.mxu0 0.0
    %700 = vmatpush1.msra.mxu0 0.0
    %701 = vmatprep.subr.mxu0 0.0
    %702 = vmatpush1.msra.mxu0 0.0
    %703 = vmatprep.subr.mxu0 0.0
    %704 = vmatpush1.msra.mxu0 0.0
    %705 = vmatprep.subr.mxu0 0.0
    %706 = vmatpush1.msra.mxu0 0.0
    %707 = vmatprep.subr.mxu0 0.0
    %708 = vmatpush1.msra.mxu0 0.0
    %709 = vmatprep.subr.mxu0 0.0
    %710 = vmatpush1.msra.mxu0 0.0
    %711 = vmatprep.subr.mxu0 0.0
    %712 = vmatpush1.msra.mxu0 0.0
    %713 = vmatprep.subr.mxu0 0.0
    %714 = vmatpush1.msra.mxu0 0.0
    %715 = vmatprep.subr.mxu0 0.0
    %716 = vmatpush1.msra.mxu0 0.0
    %717 = vmatprep.subr.mxu0 0.0
    %718 = vmatpush1.msra.mxu0 0.0
    %719 = vmatprep.subr.mxu0 0.0
    %720 = vmatpush1.msra.mxu0 0.0
    %721 = vmatprep.subr.mxu0 0.0
    %722 = vmatpush1.msra.mxu0 0.0
    %723 = vmatprep.subr.mxu0 0.0
    %724 = vmatpush1.msra.mxu0 0.0
    %725 = vmatprep.subr.mxu0 0.0
    %726 = vmatpush1.msra.mxu0 0.0
    %727 = vmatprep.subr.mxu0 0.0
    %728 = vmatpush1.msra.mxu0 0.0
    %729 = vmatprep.subr.mxu0 0.0
    %730 = vmatpush1.msra.mxu0 0.0
    %731 = vmatprep.subr.mxu0 0.0
    %732 = vmatpush1.msra.mxu0 0.0
    %733 = vmatprep.subr.mxu0 0.0
    %734 = vmatpush1.msra.mxu0 0.0
    %735 = vmatprep.subr.mxu0 0.0
    %736 = vmatpush1.msra.mxu0 0.0
    %737 = vmatprep.subr.mxu0 0.0
    %738 = vmatpush1.msra.mxu0 0.0
    %739 = vmatprep.subr.mxu0 0.0
    %740 = vmatpush1.msra.mxu0 0.0
    %741 = vmatprep.subr.mxu0 0.0
    %742 = vmatpush1.msra.mxu0 0.0
    %743 = vmatprep.subr.mxu0 0.0
    %744 = vmatpush1.msra.mxu0 0.0
    %745 = vmatprep.subr.mxu0 0.0
    %746 = vmatpush1.msra.mxu0 0.0
    %747 = vmatprep.mubr.f32.mxu0 0.0
    %748 = vmatmul.mubr.f32.gmra.mrb[0].mxu0 %v636
    %v749 = vpop.f32.mrb[0].mxu0
    %v750 = vadd.f32 0.0, %v749
    %v751 = vpop.f32.mrb[0].mxu0
    %752 = vmatprep.mubr.f32.mxu0 0.0
    %753 = vmatmul.mubr.f32.gmra.mrb[0].mxu0 %v639
    %v754 = vpop.f32.mrb[0].mxu0
    %v755 = vadd.f32 0.0, %v754
    %v756 = vpop.f32.mrb[0].mxu0
    %757 = vmatprep.mubr.f32.mxu0 0.0
    %758 = vmatmul.mubr.f32.gmra.mrb[0].mxu0 %v642
    %v759 = vpop.f32.mrb[0].mxu0
    %v760 = vadd.f32 0.0, %v759
    %v761 = vpop.f32.mrb[0].mxu0
    %762 = vmatprep.mubr.f32.mxu0 0.0
    %763 = vmatmul.mubr.f32.gmra.mrb[0].mxu0 %v645
    %v764 = vpop.f32.mrb[0].mxu0
    %v765 = vadd.f32 0.0, %v764
    %v766 = vpop.f32.mrb[0].mxu0
    %767 = vmatprep.mubr.f32.mxu0 0.0
    %768 = vmatmul.mubr.f32.gmra.mrb[0].mxu0 %v648
    %v769 = vpop.f32.mrb[0].mxu0
    %v770 = vadd.f32 0.0, %v769
    %v771 = vpop.f32.mrb[0].mxu0
    %772 = vmatprep.mubr.f32.mxu0 0.0
    %773 = vmatmul.mubr.f32.gmra.mrb[0].mxu0 %v651
    %v774 = vpop.f32.mrb[0].mxu0
    %v775 = vadd.f32 0.0, %v774
    %v776 = vpop.f32.mrb[0].mxu0
    %777 = vmatprep.mubr.f32.mxu0 0.0
    %778 = vmatmul.mubr.f32.gmra.mrb[0].mxu0 %v654
    %v779 = vpop.f32.mrb[0].mxu0
    %v780 = vadd.f32 0.0, %v779
    %v781 = vpop.f32.mrb[0].mxu0
    %782 = vmatprep.mubr.f32.mxu0 0.0
    %783 = vmatmul.mubr.f32.gmra.mrb[0].mxu0 %v657
    %v784 = vpop.f32.mrb[0].mxu0
    %v785 = vadd.f32 0.0, %v784
    %v786 = vpop.f32.mrb[0].mxu0
    %787 = vmatprep.mubr.f32.mxu0 0.0
    %788 = vmatmul.mubr.f32.gmra.mrb[0].mxu0 %v660
    %v789 = vpop.f32.mrb[0].mxu0
    %v790 = vadd.f32 0.0, %v789
    %v791 = vpop.f32.mrb[0].mxu0
    %792 = vmatprep.mubr.f32.mxu0 0.0
    %793 = vmatmul.mubr.f32.gmra.mrb[0].mxu0 %v663
    %v794 = vpop.f32.mrb[0].mxu0
    %v795 = vadd.f32 0.0, %v794
    %v796 = vpop.f32.mrb[0].mxu0
    %797 = vmatprep.mubr.f32.mxu0 0.0
    %798 = vmatmul.mubr.f32.gmra.mrb[0].mxu0 %v666
    %v799 = vpop.f32.mrb[0].mxu0
    %v800 = vadd.f32 0.0, %v799
    %v801 = vpop.f32.mrb[0].mxu0
    %802 = vmatprep.mubr.f32.mxu0 0.0
    %803 = vmatmul.mubr.f32.gmra.mrb[0].mxu0 %v669
    %v804 = vpop.f32.mrb[0].mxu0
    %v805 = vadd.f32 0.0, %v804
    %v806 = vpop.f32.mrb[0].mxu0
    %807 = vmatprep.mubr.f32.mxu0 0.0
    %808 = vmatmul.mubr.f32.gmra.mrb[0].mxu0 %v672
    %v809 = vpop.f32.mrb[0].mxu0
    %v810 = vadd.f32 0.0, %v809
    %v811 = vpop.f32.mrb[0].mxu0
    %812 = vmatprep.mubr.f32.mxu0 0.0
    %813 = vmatmul.mubr.f32.gmra.mrb[0].mxu0 %v675
    %v814 = vpop.f32.mrb[0].mxu0
    %v815 = vadd.f32 0.0, %v814
    %v816 = vpop.f32.mrb[0].mxu0
    %817 = vmatprep.mubr.f32.mxu0 0.0
    %818 = vmatmul.mubr.f32.gmra.mrb[0].mxu0 %v678
    %v819 = vpop.f32.mrb[0].mxu0
    %v820 = vadd.f32 0.0, %v819
    %v821 = vpop.f32.mrb[0].mxu0
    %822 = vmatprep.mubr.f32.mxu0 0.0
    %823 = vmatmul.mubr.f32.gmra.mrb[0].mxu0 %v681
    %v824 = vpop.f32.mrb[0].mxu0
    %v825 = vadd.f32 0.0, %v824
    %v826 = vpop.f32.mrb[0].mxu0
    %827 = vdwg.mxu0
    %v828 = vadd.f32 %v750, 0.0
    %v829 = vadd.f32 %v755, 0.0
    %v830 = vadd.f32 %v760, 0.0
    %v831 = vadd.f32 %v765, 0.0
    %v832 = vadd.f32 %v770, 0.0
    %v833 = vadd.f32 %v775, 0.0
    %v834 = vadd.f32 %v780, 0.0
    %v835 = vadd.f32 %v785, 0.0
    %v836 = vadd.f32 %v790, 0.0
    %v837 = vadd.f32 %v795, 0.0
    %v838 = vadd.f32 %v800, 0.0
    %v839 = vadd.f32 %v805, 0.0
    %v840 = vadd.f32 %v810, 0.0
    %v841 = vadd.f32 %v815, 0.0
    %v842 = vadd.f32 %v820, 0.0
    %v843 = vadd.f32 %v825, 0.0
    %v844 = vsub.f32 %v30, %v750
    %v845 = vsub.f32 %v31, %v755
    %v846 = vsub.f32 %v32, %v760
    %v847 = vsub.f32 %v33, %v765
    %v848 = vsub.f32 %v34, %v770
    %v849 = vsub.f32 %v35, %v775
    %v850 = vsub.f32 %v36, %v780
    %v851 = vsub.f32 %v37, %v785
    %v852 = vsub.f32 %v38, %v790
    %v853 = vsub.f32 %v39, %v795
    %v854 = vsub.f32 %v40, %v800
    %v855 = vsub.f32 %v41, %v805
    %v856 = vsub.f32 %v42, %v810
    %v857 = vsub.f32 %v43, %v815
    %v858 = vsub.f32 %v44, %v820
    %v859 = vsub.f32 %v45, %v825
    %v860 = vlaneseq
    %v861 = vshrl.u32 %v860, 7
    %v862 = vsub.s32 %v29, %v861
    %v863 = vrot.slane %v361, %v862
    %v864 = vadd.s32 %v29, 4294967288
    %v865 = vlaneseq
    %v866 = vshrl.u32 %v865, 7
    %v867 = vsub.s32 %v864, %v866
    %v868 = vrot.slane %v376, %v867
    %vm869 = vcmask 130112
    %v870 = vsel %vm869, %v868, %v863
    %v871 = vadd.s32 %v29, 4294967280
    %v872 = vlaneseq
    %v873 = vshrl.u32 %v872, 7
    %v874 = vsub.s32 %v871, %v873
    %v875 = vrot.slane %v391, %v874
    %vm876 = vcmask 195712
    %v877 = vsel %vm876, %v875, %v870
    %v878 = vadd.s32 %v29, 4294967272
    %v879 = vlaneseq
    %v880 = vshrl.u32 %v879, 7
    %v881 = vsub.s32 %v878, %v880
    %v882 = vrot.slane %v406, %v881
    %vm883 = vcmask 261312
    %v884 = vsel %vm883, %v882, %v877
    %v885 = vadd.s32 %v29, 4294967264
    %v886 = vlaneseq
    %v887 = vshrl.u32 %v886, 7
    %v888 = vsub.s32 %v885, %v887
    %v889 = vrot.slane %v421, %v888
    %vm890 = vcmask 326912
    %v891 = vsel %vm890, %v889, %v884
    %v892 = vadd.s32 %v29, 4294967256
    %v893 = vlaneseq
    %v894 = vshrl.u32 %v893, 7
    %v895 = vsub.s32 %v892, %v894
    %v896 = vrot.slane %v436, %v895
    %vm897 = vcmask 392512
    %v898 = vsel %vm897, %v896, %v891
    %v899 = vadd.s32 %v29, 4294967248
    %v900 = vlaneseq
    %v901 = vshrl.u32 %v900, 7
    %v902 = vsub.s32 %v899, %v901
    %v903 = vrot.slane %v451, %v902
    %vm904 = vcmask 458112
    %v905 = vsel %vm904, %v903, %v898
    %v906 = vadd.s32 %v29, 4294967240
    %v907 = vlaneseq
    %v908 = vshrl.u32 %v907, 7
    %v909 = vsub.s32 %v906, %v908
    %v910 = vrot.slane %v466, %v909
    %vm911 = vcmask 523712
    %v912 = vsel %vm911, %v910, %v905
    %v913 = vadd.s32 %v29, 4294967232
    %v914 = vlaneseq
    %v915 = vshrl.u32 %v914, 7
    %v916 = vsub.s32 %v913, %v915
    %v917 = vrot.slane %v481, %v916
    %vm918 = vcmask 589312
    %v919 = vsel %vm918, %v917, %v912
    %v920 = vadd.s32 %v29, 4294967224
    %v921 = vlaneseq
    %v922 = vshrl.u32 %v921, 7
    %v923 = vsub.s32 %v920, %v922
    %v924 = vrot.slane %v496, %v923
    %vm925 = vcmask 654912
    %v926 = vsel %vm925, %v924, %v919
    %v927 = vadd.s32 %v29, 4294967216
    %v928 = vlaneseq
    %v929 = vshrl.u32 %v928, 7
    %v930 = vsub.s32 %v927, %v929
    %v931 = vrot.slane %v511, %v930
    %vm932 = vcmask 720512
    %v933 = vsel %vm932, %v931, %v926
    %v934 = vadd.s32 %v29, 4294967208
    %v935 = vlaneseq
    %v936 = vshrl.u32 %v935, 7
    %v937 = vsub.s32 %v934, %v936
    %v938 = vrot.slane %v526, %v937
    %vm939 = vcmask 786112
    %v940 = vsel %vm939, %v938, %v933
    %v941 = vadd.s32 %v29, 4294967200
    %v942 = vlaneseq
    %v943 = vshrl.u32 %v942, 7
    %v944 = vsub.s32 %v941, %v943
    %v945 = vrot.slane %v541, %v944
    %vm946 = vcmask 851712
    %v947 = vsel %vm946, %v945, %v940
    %v948 = vadd.s32 %v29, 4294967192
    %v949 = vlaneseq
    %v950 = vshrl.u32 %v949, 7
    %v951 = vsub.s32 %v948, %v950
    %v952 = vrot.slane %v556, %v951
    %vm953 = vcmask 917312
    %v954 = vsel %vm953, %v952, %v947
    %v955 = vadd.s32 %v29, 4294967184
    %v956 = vlaneseq
    %v957 = vshrl.u32 %v956, 7
    %v958 = vsub.s32 %v955, %v957
    %v959 = vrot.slane %v571, %v958
    %vm960 = vcmask 982912
    %v961 = vsel %vm960, %v959, %v954
    %v962 = vadd.s32 %v29, 4294967176
    %v963 = vlaneseq
    %v964 = vshrl.u32 %v963, 7
    %v965 = vsub.s32 %v962, %v964
    %v966 = vrot.slane %v586, %v965
    %vm967 = vcmask 1048512
    %v968 = vsel %vm967, %v966, %v961
    %969 = vst [vmem:[#allocation2] sm:$0x1] %v968
    %v971 = vsel %vm46, %v844, 0
    %v974 = vsel %vm46, %v845, 0
    %v977 = vsel %vm46, %v846, 0
    %v980 = vsel %vm46, %v847, 0
    %v983 = vsel %vm46, %v848, 0
    %v986 = vsel %vm46, %v849, 0
    %v989 = vsel %vm46, %v850, 0
    %v992 = vsel %vm46, %v851, 0
    %v995 = vsel %vm46, %v852, 0
    %v998 = vsel %vm46, %v853, 0
    %v1001 = vsel %vm46, %v854, 0
    %v1004 = vsel %vm46, %v855, 0
    %v1007 = vsel %vm46, %v856, 0
    %v1010 = vsel %vm46, %v857, 0
    %v1013 = vsel %vm46, %v858, 0
    %v1016 = vsel %vm46, %v859, 0
    %v1019 = vsel %vm46, %v20, 0
    %v1022 = vsel %vm46, %v21, 0
    %1024 = vmatprep.subr.mxu0 0.0
    %1025 = vmatpush1.xpose.msra.mxu0 %v1019
    %1026 = vmatprep.subr.mxu0 0.0
    %1027 = vmatpush1.xpose.msra.mxu0 %v1022
    %1028 = vmatprep.subr.mxu0 0.0
    %1029 = vmatpush1.xpose.msra.mxu0 0.0
    %1030 = vmatprep.subr.mxu0 0.0
    %1031 = vmatpush1.xpose.msra.mxu0 0.0
    %1032 = vmatprep.subr.mxu0 0.0
    %1033 = vmatpush1.xpose.msra.mxu0 0.0
    %1034 = vmatprep.subr.mxu0 0.0
    %1035 = vmatpush1.xpose.msra.mxu0 0.0
    %1036 = vmatprep.subr.mxu0 0.0
    %1037 = vmatpush1.xpose.msra.mxu0 0.0
    %1038 = vmatprep.subr.mxu0 0.0
    %1039 = vmatpush1.xpose.msra.mxu0 0.0
    %1040 = vmatprep.subr.mxu0 0.0
    %1041 = vmatpush1.xpose.msra.mxu0 0.0
    %1042 = vmatprep.subr.mxu0 0.0
    %1043 = vmatpush1.xpose.msra.mxu0 0.0
    %1044 = vmatprep.subr.mxu0 0.0
    %1045 = vmatpush1.xpose.msra.mxu0 0.0
    %1046 = vmatprep.subr.mxu0 0.0
    %1047 = vmatpush1.xpose.msra.mxu0 0.0
    %1048 = vmatprep.subr.mxu0 0.0
    %1049 = vmatpush1.xpose.msra.mxu0 0.0
    %1050 = vmatprep.subr.mxu0 0.0
    %1051 = vmatpush1.xpose.msra.mxu0 0.0
    %1052 = vmatprep.subr.mxu0 0.0
    %1053 = vmatpush1.xpose.msra.mxu0 0.0
    %1054 = vmatprep.subr.mxu0 0.0
    %1055 = vmatpush1.xpose.msra.mxu0 0.0
    %1056 = vmatprep.subr.mxu0 0.0
    %1057 = vmatpush1.xpose.msra.mxu0 0.0
    %1058 = vmatprep.subr.mxu0 0.0
    %1059 = vmatpush1.xpose.msra.mxu0 0.0
    %1060 = vmatprep.subr.mxu0 0.0
    %1061 = vmatpush1.xpose.msra.mxu0 0.0
    %1062 = vmatprep.subr.mxu0 0.0
    %1063 = vmatpush1.xpose.msra.mxu0 0.0
    %1064 = vmatprep.subr.mxu0 0.0
    %1065 = vmatpush1.xpose.msra.mxu0 0.0
    %1066 = vmatprep.subr.mxu0 0.0
    %1067 = vmatpush1.xpose.msra.mxu0 0.0
    %1068 = vmatprep.subr.mxu0 0.0
    %1069 = vmatpush1.xpose.msra.mxu0 0.0
    %1070 = vmatprep.subr.mxu0 0.0
    %1071 = vmatpush1.xpose.msra.mxu0 0.0
    %1072 = vmatprep.subr.mxu0 0.0
    %1073 = vmatpush1.xpose.msra.mxu0 0.0
    %1074 = vmatprep.subr.mxu0 0.0
    %1075 = vmatpush1.xpose.msra.mxu0 0.0
    %1076 = vmatprep.subr.mxu0 0.0
    %1077 = vmatpush1.xpose.msra.mxu0 0.0
    %1078 = vmatprep.subr.mxu0 0.0
    %1079 = vmatpush1.xpose.msra.mxu0 0.0
    %1080 = vmatprep.subr.mxu0 0.0
    %1081 = vmatpush1.xpose.msra.mxu0 0.0
    %1082 = vmatprep.subr.mxu0 0.0
    %1083 = vmatpush1.xpose.msra.mxu0 0.0
    %1084 = vmatprep.subr.mxu0 0.0
    %1085 = vmatpush1.xpose.msra.mxu0 0.0
    %1086 = vmatprep.subr.mxu0 0.0
    %1087 = vmatpush1.xpose.msra.mxu0 0.0
    %1088 = vmatprep.mubr.f32.mxu0 0.0
    %1089 = vmatmul.mubr.f32.gmra.mrb[0].mxu0 %v971
    %v1090 = vpop.f32.mrb[0].mxu0
    %v1091 = vadd.f32 0.0, %v1090
    %v1092 = vpop.f32.mrb[0].mxu0
    %1093 = vmatprep.mubr.f32.mxu0 0.0
    %1094 = vmatmul.mubr.f32.gmra.mrb[0].mxu0 %v974
    %v1095 = vpop.f32.mrb[0].mxu0
    %v1096 = vadd.f32 0.0, %v1095
    %v1097 = vpop.f32.mrb[0].mxu0
    %1098 = vmatprep.mubr.f32.mxu0 0.0
    %1099 = vmatmul.mubr.f32.gmra.mrb[0].mxu0 %v977
    %v1100 = vpop.f32.mrb[0].mxu0
    %v1101 = vadd.f32 0.0, %v1100
    %v1102 = vpop.f32.mrb[0].mxu0
    %1103 = vmatprep.mubr.f32.mxu0 0.0
    %1104 = vmatmul.mubr.f32.gmra.mrb[0].mxu0 %v980
    %v1105 = vpop.f32.mrb[0].mxu0
    %v1106 = vadd.f32 0.0, %v1105
    %v1107 = vpop.f32.mrb[0].mxu0
    %1108 = vmatprep.mubr.f32.mxu0 0.0
    %1109 = vmatmul.mubr.f32.gmra.mrb[0].mxu0 %v983
    %v1110 = vpop.f32.mrb[0].mxu0
    %v1111 = vadd.f32 0.0, %v1110
    %v1112 = vpop.f32.mrb[0].mxu0
    %1113 = vmatprep.mubr.f32.mxu0 0.0
    %1114 = vmatmul.mubr.f32.gmra.mrb[0].mxu0 %v986
    %v1115 = vpop.f32.mrb[0].mxu0
    %v1116 = vadd.f32 0.0, %v1115
    %v1117 = vpop.f32.mrb[0].mxu0
    %1118 = vmatprep.mubr.f32.mxu0 0.0
    %1119 = vmatmul.mubr.f32.gmra.mrb[0].mxu0 %v989
    %v1120 = vpop.f32.mrb[0].mxu0
    %v1121 = vadd.f32 0.0, %v1120
    %v1122 = vpop.f32.mrb[0].mxu0
    %1123 = vmatprep.mubr.f32.mxu0 0.0
    %1124 = vmatmul.mubr.f32.gmra.mrb[0].mxu0 %v992
    %v1125 = vpop.f32.mrb[0].mxu0
    %v1126 = vadd.f32 0.0, %v1125
    %v1127 = vpop.f32.mrb[0].mxu0
    %1128 = vmatprep.mubr.f32.mxu0 0.0
    %1129 = vmatmul.mubr.f32.gmra.mrb[0].mxu0 %v995
    %v1130 = vpop.f32.mrb[0].mxu0
    %v1131 = vadd.f32 0.0, %v1130
    %v1132 = vpop.f32.mrb[0].mxu0
    %1133 = vmatprep.mubr.f32.mxu0 0.0
    %1134 = vmatmul.mubr.f32.gmra.mrb[0].mxu0 %v998
    %v1135 = vpop.f32.mrb[0].mxu0
    %v1136 = vadd.f32 0.0, %v1135
    %v1137 = vpop.f32.mrb[0].mxu0
    %1138 = vmatprep.mubr.f32.mxu0 0.0
    %1139 = vmatmul.mubr.f32.gmra.mrb[0].mxu0 %v1001
    %v1140 = vpop.f32.mrb[0].mxu0
    %v1141 = vadd.f32 0.0, %v1140
    %v1142 = vpop.f32.mrb[0].mxu0
    %1143 = vmatprep.mubr.f32.mxu0 0.0
    %1144 = vmatmul.mubr.f32.gmra.mrb[0].mxu0 %v1004
    %v1145 = vpop.f32.mrb[0].mxu0
    %v1146 = vadd.f32 0.0, %v1145
    %v1147 = vpop.f32.mrb[0].mxu0
    %1148 = vmatprep.mubr.f32.mxu0 0.0
    %1149 = vmatmul.mubr.f32.gmra.mrb[0].mxu0 %v1007
    %v1150 = vpop.f32.mrb[0].mxu0
    %v1151 = vadd.f32 0.0, %v1150
    %v1152 = vpop.f32.mrb[0].mxu0
    %1153 = vmatprep.mubr.f32.mxu0 0.0
    %1154 = vmatmul.mubr.f32.gmra.mrb[0].mxu0 %v1010
    %v1155 = vpop.f32.mrb[0].mxu0
    %v1156 = vadd.f32 0.0, %v1155
    %v1157 = vpop.f32.mrb[0].mxu0
    %1158 = vmatprep.mubr.f32.mxu0 0.0
    %1159 = vmatmul.mubr.f32.gmra.mrb[0].mxu0 %v1013
    %v1160 = vpop.f32.mrb[0].mxu0
    %v1161 = vadd.f32 0.0, %v1160
    %v1162 = vpop.f32.mrb[0].mxu0
    %1163 = vmatprep.mubr.f32.mxu0 0.0
    %1164 = vmatmul.mubr.f32.gmra.mrb[0].mxu0 %v1016
    %v1165 = vpop.f32.mrb[0].mxu0
    %v1166 = vadd.f32 0.0, %v1165
    %v1167 = vpop.f32.mrb[0].mxu0
    %1168 = vdwg.mxu0
    %v1169 = vlaneseq
    %v1170 = vshrl.u32 %v1169, 7
    %v1171 = vsub.s32 0, %v1170
    %v1172 = vrot.slane %v26, %v1171
    %v1173 = vsub.f32 %v1172, %v1091
    %v1174 = vsub.f32 %v1172, %v1096
    %v1175 = vsub.f32 %v1172, %v1101
    %v1176 = vsub.f32 %v1172, %v1106
    %v1177 = vsub.f32 %v1172, %v1111
    %v1178 = vsub.f32 %v1172, %v1116
    %v1179 = vsub.f32 %v1172, %v1121
    %v1180 = vsub.f32 %v1172, %v1126
    %v1181 = vsub.f32 %v1172, %v1131
    %v1182 = vsub.f32 %v1172, %v1136
    %v1183 = vsub.f32 %v1172, %v1141
    %v1184 = vsub.f32 %v1172, %v1146
    %v1185 = vsub.f32 %v1172, %v1151
    %v1186 = vsub.f32 %v1172, %v1156
    %v1187 = vsub.f32 %v1172, %v1161
    %v1188 = vsub.f32 %v1172, %v1166
    %v1189 = vsel %vm266, %v1173, inf
    %1190 = vmin.xlane.f32.xlu0 %v1189
    %v1191 = vpop.xlane.xlu0 %1190
    %v1192 = vsel %vm266, %v1174, inf
    %1193 = vmin.xlane.f32.xlu0 %v1192
    %v1194 = vpop.xlane.xlu0 %1193
    %v1195 = vsel %vm266, %v1175, inf
    %1196 = vmin.xlane.f32.xlu0 %v1195
    %v1197 = vpop.xlane.xlu0 %1196
    %v1198 = vsel %vm266, %v1176, inf
    %1199 = vmin.xlane.f32.xlu0 %v1198
    %v1200 = vpop.xlane.xlu0 %1199
    %v1201 = vsel %vm266, %v1177, inf
    %1202 = vmin.xlane.f32.xlu0 %v1201
    %v1203 = vpop.xlane.xlu0 %1202
    %v1204 = vsel %vm266, %v1178, inf
    %1205 = vmin.xlane.f32.xlu0 %v1204
    %v1206 = vpop.xlane.xlu0 %1205
    %v1207 = vsel %vm266, %v1179, inf
    %1208 = vmin.xlane.f32.xlu0 %v1207
    %v1209 = vpop.xlane.xlu0 %1208
    %v1210 = vsel %vm266, %v1180, inf
    %1211 = vmin.xlane.f32.xlu0 %v1210
    %v1212 = vpop.xlane.xlu0 %1211
    %v1213 = vsel %vm266, %v1181, inf
    %1214 = vmin.xlane.f32.xlu0 %v1213
    %v1215 = vpop.xlane.xlu0 %1214
    %v1216 = vsel %vm266, %v1182, inf
    %1217 = vmin.xlane.f32.xlu0 %v1216
    %v1218 = vpop.xlane.xlu0 %1217
    %v1219 = vsel %vm266, %v1183, inf
    %1220 = vmin.xlane.f32.xlu0 %v1219
    %v1221 = vpop.xlane.xlu0 %1220
    %v1222 = vsel %vm266, %v1184, inf
    %1223 = vmin.xlane.f32.xlu0 %v1222
    %v1224 = vpop.xlane.xlu0 %1223
    %v1225 = vsel %vm266, %v1185, inf
    %1226 = vmin.xlane.f32.xlu0 %v1225
    %v1227 = vpop.xlane.xlu0 %1226
    %v1228 = vsel %vm266, %v1186, inf
    %1229 = vmin.xlane.f32.xlu0 %v1228
    %v1230 = vpop.xlane.xlu0 %1229
    %v1231 = vsel %vm266, %v1187, inf
    %1232 = vmin.xlane.f32.xlu0 %v1231
    %v1233 = vpop.xlane.xlu0 %1232
    %v1234 = vsel %vm266, %v1188, inf
    %1235 = vmin.xlane.f32.xlu0 %v1234
    %v1236 = vpop.xlane.xlu0 %1235
    %vm1237 = vcmp.eq.f32.partialorder %v1173, %v1191
    %vm1238 = vcmp.eq.f32.partialorder %v1174, %v1194
    %vm1239 = vcmp.eq.f32.partialorder %v1175, %v1197
    %vm1240 = vcmp.eq.f32.partialorder %v1176, %v1200
    %vm1241 = vcmp.eq.f32.partialorder %v1177, %v1203
    %vm1242 = vcmp.eq.f32.partialorder %v1178, %v1206
    %vm1243 = vcmp.eq.f32.partialorder %v1179, %v1209
    %vm1244 = vcmp.eq.f32.partialorder %v1180, %v1212
    %vm1245 = vcmp.eq.f32.partialorder %v1181, %v1215
    %vm1246 = vcmp.eq.f32.partialorder %v1182, %v1218
    %vm1247 = vcmp.eq.f32.partialorder %v1183, %v1221
    %vm1248 = vcmp.eq.f32.partialorder %v1184, %v1224
    %vm1249 = vcmp.eq.f32.partialorder %v1185, %v1227
    %vm1250 = vcmp.eq.f32.partialorder %v1186, %v1230
    %vm1251 = vcmp.eq.f32.partialorder %v1187, %v1233
    %vm1252 = vcmp.eq.f32.partialorder %v1188, %v1236
    %v1253 = vsel %vm1237, %v29, 16
    %v1254 = vsel %vm1238, %v29, 16
    %v1255 = vsel %vm1239, %v29, 16
    %v1256 = vsel %vm1240, %v29, 16
    %v1257 = vsel %vm1241, %v29, 16
    %v1258 = vsel %vm1242, %v29, 16
    %v1259 = vsel %vm1243, %v29, 16
    %v1260 = vsel %vm1244, %v29, 16
    %v1261 = vsel %vm1245, %v29, 16
    %v1262 = vsel %vm1246, %v29, 16
    %v1263 = vsel %vm1247, %v29, 16
    %v1264 = vsel %vm1248, %v29, 16
    %v1265 = vsel %vm1249, %v29, 16
    %v1266 = vsel %vm1250, %v29, 16
    %v1267 = vsel %vm1251, %v29, 16
    %v1268 = vsel %vm1252, %v29, 16
    %v1269 = vsel %vm266, %v1253, 2147483647
    %v1270 = vand.u32 %v1269, 65535
    %v1271 = vshra.s32 %v1269, 16
    %v1272 = vcvt.s32.f32 %v1270
    %v1273 = vcvt.s32.f32 %v1271
    %1274 = vmin.xlane.f32.xlu0 %v1273
    %v1275 = vpop.xlane.xlu0 %1274
    %vm1276 = vcmp.eq.f32.partialorder %v1273, %v1275
    %v1277 = vsel %vm1276, %v1272, inf
    %1278 = vmin.xlane.f32.xlu0 %v1277
    %v1279 = vpop.xlane.xlu0 %1278
    %v1280 = vcvt.f32.s32 %v1279
    %v1281 = vcvt.f32.s32 %v1275
    %v1282 = vshll.u32 %v1281, 16
    %v1283 = vadd.s32 %v1282, %v1280
    %v1284 = vsel %vm266, %v1254, 2147483647
    %v1285 = vand.u32 %v1284, 65535
    %v1286 = vshra.s32 %v1284, 16
    %v1287 = vcvt.s32.f32 %v1285
    %v1288 = vcvt.s32.f32 %v1286
    %1289 = vmin.xlane.f32.xlu0 %v1288
    %v1290 = vpop.xlane.xlu0 %1289
    %vm1291 = vcmp.eq.f32.partialorder %v1288, %v1290
    %v1292 = vsel %vm1291, %v1287, inf
    %1293 = vmin.xlane.f32.xlu0 %v1292
    %v1294 = vpop.xlane.xlu0 %1293
    %v1295 = vcvt.f32.s32 %v1294
    %v1296 = vcvt.f32.s32 %v1290
    %v1297 = vshll.u32 %v1296, 16
    %v1298 = vadd.s32 %v1297, %v1295
    %v1299 = vsel %vm266, %v1255, 2147483647
    %v1300 = vand.u32 %v1299, 65535
    %v1301 = vshra.s32 %v1299, 16
    %v1302 = vcvt.s32.f32 %v1300
    %v1303 = vcvt.s32.f32 %v1301
    %1304 = vmin.xlane.f32.xlu0 %v1303
    %v1305 = vpop.xlane.xlu0 %1304
    %vm1306 = vcmp.eq.f32.partialorder %v1303, %v1305
    %v1307 = vsel %vm1306, %v1302, inf
    %1308 = vmin.xlane.f32.xlu0 %v1307
    %v1309 = vpop.xlane.xlu0 %1308
    %v1310 = vcvt.f32.s32 %v1309
    %v1311 = vcvt.f32.s32 %v1305
    %v1312 = vshll.u32 %v1311, 16
    %v1313 = vadd.s32 %v1312, %v1310
    %v1314 = vsel %vm266, %v1256, 2147483647
    %v1315 = vand.u32 %v1314, 65535
    %v1316 = vshra.s32 %v1314, 16
    %v1317 = vcvt.s32.f32 %v1315
    %v1318 = vcvt.s32.f32 %v1316
    %1319 = vmin.xlane.f32.xlu0 %v1318
    %v1320 = vpop.xlane.xlu0 %1319
    %vm1321 = vcmp.eq.f32.partialorder %v1318, %v1320
    %v1322 = vsel %vm1321, %v1317, inf
    %1323 = vmin.xlane.f32.xlu0 %v1322
    %v1324 = vpop.xlane.xlu0 %1323
    %v1325 = vcvt.f32.s32 %v1324
    %v1326 = vcvt.f32.s32 %v1320
    %v1327 = vshll.u32 %v1326, 16
    %v1328 = vadd.s32 %v1327, %v1325
    %v1329 = vsel %vm266, %v1257, 2147483647
    %v1330 = vand.u32 %v1329, 65535
    %v1331 = vshra.s32 %v1329, 16
    %v1332 = vcvt.s32.f32 %v1330
    %v1333 = vcvt.s32.f32 %v1331
    %1334 = vmin.xlane.f32.xlu0 %v1333
    %v1335 = vpop.xlane.xlu0 %1334
    %vm1336 = vcmp.eq.f32.partialorder %v1333, %v1335
    %v1337 = vsel %vm1336, %v1332, inf
    %1338 = vmin.xlane.f32.xlu0 %v1337
    %v1339 = vpop.xlane.xlu0 %1338
    %v1340 = vcvt.f32.s32 %v1339
    %v1341 = vcvt.f32.s32 %v1335
    %v1342 = vshll.u32 %v1341, 16
    %v1343 = vadd.s32 %v1342, %v1340
    %v1344 = vsel %vm266, %v1258, 2147483647
    %v1345 = vand.u32 %v1344, 65535
    %v1346 = vshra.s32 %v1344, 16
    %v1347 = vcvt.s32.f32 %v1345
    %v1348 = vcvt.s32.f32 %v1346
    %1349 = vmin.xlane.f32.xlu0 %v1348
    %v1350 = vpop.xlane.xlu0 %1349
    %vm1351 = vcmp.eq.f32.partialorder %v1348, %v1350
    %v1352 = vsel %vm1351, %v1347, inf
    %1353 = vmin.xlane.f32.xlu0 %v1352
    %v1354 = vpop.xlane.xlu0 %1353
    %v1355 = vcvt.f32.s32 %v1354
    %v1356 = vcvt.f32.s32 %v1350
    %v1357 = vshll.u32 %v1356, 16
    %v1358 = vadd.s32 %v1357, %v1355
    %v1359 = vsel %vm266, %v1259, 2147483647
    %v1360 = vand.u32 %v1359, 65535
    %v1361 = vshra.s32 %v1359, 16
    %v1362 = vcvt.s32.f32 %v1360
    %v1363 = vcvt.s32.f32 %v1361
    %1364 = vmin.xlane.f32.xlu0 %v1363
    %v1365 = vpop.xlane.xlu0 %1364
    %vm1366 = vcmp.eq.f32.partialorder %v1363, %v1365
    %v1367 = vsel %vm1366, %v1362, inf
    %1368 = vmin.xlane.f32.xlu0 %v1367
    %v1369 = vpop.xlane.xlu0 %1368
    %v1370 = vcvt.f32.s32 %v1369
    %v1371 = vcvt.f32.s32 %v1365
    %v1372 = vshll.u32 %v1371, 16
    %v1373 = vadd.s32 %v1372, %v1370
    %v1374 = vsel %vm266, %v1260, 2147483647
    %v1375 = vand.u32 %v1374, 65535
    %v1376 = vshra.s32 %v1374, 16
    %v1377 = vcvt.s32.f32 %v1375
    %v1378 = vcvt.s32.f32 %v1376
    %1379 = vmin.xlane.f32.xlu0 %v1378
    %v1380 = vpop.xlane.xlu0 %1379
    %vm1381 = vcmp.eq.f32.partialorder %v1378, %v1380
    %v1382 = vsel %vm1381, %v1377, inf
    %1383 = vmin.xlane.f32.xlu0 %v1382
    %v1384 = vpop.xlane.xlu0 %1383
    %v1385 = vcvt.f32.s32 %v1384
    %v1386 = vcvt.f32.s32 %v1380
    %v1387 = vshll.u32 %v1386, 16
    %v1388 = vadd.s32 %v1387, %v1385
    %v1389 = vsel %vm266, %v1261, 2147483647
    %v1390 = vand.u32 %v1389, 65535
    %v1391 = vshra.s32 %v1389, 16
    %v1392 = vcvt.s32.f32 %v1390
    %v1393 = vcvt.s32.f32 %v1391
    %1394 = vmin.xlane.f32.xlu0 %v1393
    %v1395 = vpop.xlane.xlu0 %1394
    %vm1396 = vcmp.eq.f32.partialorder %v1393, %v1395
    %v1397 = vsel %vm1396, %v1392, inf
    %1398 = vmin.xlane.f32.xlu0 %v1397
    %v1399 = vpop.xlane.xlu0 %1398
    %v1400 = vcvt.f32.s32 %v1399
    %v1401 = vcvt.f32.s32 %v1395
    %v1402 = vshll.u32 %v1401, 16
    %v1403 = vadd.s32 %v1402, %v1400
    %v1404 = vsel %vm266, %v1262, 2147483647
    %v1405 = vand.u32 %v1404, 65535
    %v1406 = vshra.s32 %v1404, 16
    %v1407 = vcvt.s32.f32 %v1405
    %v1408 = vcvt.s32.f32 %v1406
    %1409 = vmin.xlane.f32.xlu0 %v1408
    %v1410 = vpop.xlane.xlu0 %1409
    %vm1411 = vcmp.eq.f32.partialorder %v1408, %v1410
    %v1412 = vsel %vm1411, %v1407, inf
    %1413 = vmin.xlane.f32.xlu0 %v1412
    %v1414 = vpop.xlane.xlu0 %1413
    %v1415 = vcvt.f32.s32 %v1414
    %v1416 = vcvt.f32.s32 %v1410
    %v1417 = vshll.u32 %v1416, 16
    %v1418 = vadd.s32 %v1417, %v1415
    %v1419 = vsel %vm266, %v1263, 2147483647
    %v1420 = vand.u32 %v1419, 65535
    %v1421 = vshra.s32 %v1419, 16
    %v1422 = vcvt.s32.f32 %v1420
    %v1423 = vcvt.s32.f32 %v1421
    %1424 = vmin.xlane.f32.xlu0 %v1423
    %v1425 = vpop.xlane.xlu0 %1424
    %vm1426 = vcmp.eq.f32.partialorder %v1423, %v1425
    %v1427 = vsel %vm1426, %v1422, inf
    %1428 = vmin.xlane.f32.xlu0 %v1427
    %v1429 = vpop.xlane.xlu0 %1428
    %v1430 = vcvt.f32.s32 %v1429
    %v1431 = vcvt.f32.s32 %v1425
    %v1432 = vshll.u32 %v1431, 16
    %v1433 = vadd.s32 %v1432, %v1430
    %v1434 = vsel %vm266, %v1264, 2147483647
    %v1435 = vand.u32 %v1434, 65535
    %v1436 = vshra.s32 %v1434, 16
    %v1437 = vcvt.s32.f32 %v1435
    %v1438 = vcvt.s32.f32 %v1436
    %1439 = vmin.xlane.f32.xlu0 %v1438
    %v1440 = vpop.xlane.xlu0 %1439
    %vm1441 = vcmp.eq.f32.partialorder %v1438, %v1440
    %v1442 = vsel %vm1441, %v1437, inf
    %1443 = vmin.xlane.f32.xlu0 %v1442
    %v1444 = vpop.xlane.xlu0 %1443
    %v1445 = vcvt.f32.s32 %v1444
    %v1446 = vcvt.f32.s32 %v1440
    %v1447 = vshll.u32 %v1446, 16
    %v1448 = vadd.s32 %v1447, %v1445
    %v1449 = vsel %vm266, %v1265, 2147483647
    %v1450 = vand.u32 %v1449, 65535
    %v1451 = vshra.s32 %v1449, 16
    %v1452 = vcvt.s32.f32 %v1450
    %v1453 = vcvt.s32.f32 %v1451
    %1454 = vmin.xlane.f32.xlu0 %v1453
    %v1455 = vpop.xlane.xlu0 %1454
    %vm1456 = vcmp.eq.f32.partialorder %v1453, %v1455
    %v1457 = vsel %vm1456, %v1452, inf
    %1458 = vmin.xlane.f32.xlu0 %v1457
    %v1459 = vpop.xlane.xlu0 %1458
    %v1460 = vcvt.f32.s32 %v1459
    %v1461 = vcvt.f32.s32 %v1455
    %v1462 = vshll.u32 %v1461, 16
    %v1463 = vadd.s32 %v1462, %v1460
    %v1464 = vsel %vm266, %v1266, 2147483647
    %v1465 = vand.u32 %v1464, 65535
    %v1466 = vshra.s32 %v1464, 16
    %v1467 = vcvt.s32.f32 %v1465
    %v1468 = vcvt.s32.f32 %v1466
    %1469 = vmin.xlane.f32.xlu0 %v1468
    %v1470 = vpop.xlane.xlu0 %1469
    %vm1471 = vcmp.eq.f32.partialorder %v1468, %v1470
    %v1472 = vsel %vm1471, %v1467, inf
    %1473 = vmin.xlane.f32.xlu0 %v1472
    %v1474 = vpop.xlane.xlu0 %1473
    %v1475 = vcvt.f32.s32 %v1474
    %v1476 = vcvt.f32.s32 %v1470
    %v1477 = vshll.u32 %v1476, 16
    %v1478 = vadd.s32 %v1477, %v1475
    %v1479 = vsel %vm266, %v1267, 2147483647
    %v1480 = vand.u32 %v1479, 65535
    %v1481 = vshra.s32 %v1479, 16
    %v1482 = vcvt.s32.f32 %v1480
    %v1483 = vcvt.s32.f32 %v1481
    %1484 = vmin.xlane.f32.xlu0 %v1483
    %v1485 = vpop.xlane.xlu0 %1484
    %vm1486 = vcmp.eq.f32.partialorder %v1483, %v1485
    %v1487 = vsel %vm1486, %v1482, inf
    %1488 = vmin.xlane.f32.xlu0 %v1487
    %v1489 = vpop.xlane.xlu0 %1488
    %v1490 = vcvt.f32.s32 %v1489
    %v1491 = vcvt.f32.s32 %v1485
    %v1492 = vshll.u32 %v1491, 16
    %v1493 = vadd.s32 %v1492, %v1490
    %v1494 = vsel %vm266, %v1268, 2147483647
    %v1495 = vand.u32 %v1494, 65535
    %v1496 = vshra.s32 %v1494, 16
    %v1497 = vcvt.s32.f32 %v1495
    %v1498 = vcvt.s32.f32 %v1496
    %1499 = vmin.xlane.f32.xlu0 %v1498
    %v1500 = vpop.xlane.xlu0 %1499
    %vm1501 = vcmp.eq.f32.partialorder %v1498, %v1500
    %v1502 = vsel %vm1501, %v1497, inf
    %1503 = vmin.xlane.f32.xlu0 %v1502
    %v1504 = vpop.xlane.xlu0 %1503
    %v1505 = vcvt.f32.s32 %v1504
    %v1506 = vcvt.f32.s32 %v1500
    %v1507 = vshll.u32 %v1506, 16
    %v1508 = vadd.s32 %v1507, %v1505
    %vm1509 = vcmp.eq.s32.totalorder %v29, %v1283
    %vm1510 = vcmp.eq.s32.totalorder %v29, %v1298
    %vm1511 = vcmp.eq.s32.totalorder %v29, %v1313
    %vm1512 = vcmp.eq.s32.totalorder %v29, %v1328
    %vm1513 = vcmp.eq.s32.totalorder %v29, %v1343
    %vm1514 = vcmp.eq.s32.totalorder %v29, %v1358
    %vm1515 = vcmp.eq.s32.totalorder %v29, %v1373
    %vm1516 = vcmp.eq.s32.totalorder %v29, %v1388
    %vm1517 = vcmp.eq.s32.totalorder %v29, %v1403
    %vm1518 = vcmp.eq.s32.totalorder %v29, %v1418
    %vm1519 = vcmp.eq.s32.totalorder %v29, %v1433
    %vm1520 = vcmp.eq.s32.totalorder %v29, %v1448
    %vm1521 = vcmp.eq.s32.totalorder %v29, %v1463
    %vm1522 = vcmp.eq.s32.totalorder %v29, %v1478
    %vm1523 = vcmp.eq.s32.totalorder %v29, %v1493
    %vm1524 = vcmp.eq.s32.totalorder %v29, %v1508
    %v1525 = vsel %vm1509, 1, 0
    %v1526 = vsel %vm1510, 1, 0
    %v1527 = vsel %vm1511, 1, 0
    %v1528 = vsel %vm1512, 1, 0
    %v1529 = vsel %vm1513, 1, 0
    %v1530 = vsel %vm1514, 1, 0
    %v1531 = vsel %vm1515, 1, 0
    %v1532 = vsel %vm1516, 1, 0
    %v1533 = vsel %vm1517, 1, 0
    %v1534 = vsel %vm1518, 1, 0
    %v1535 = vsel %vm1519, 1, 0
    %v1536 = vsel %vm1520, 1, 0
    %v1537 = vsel %vm1521, 1, 0
    %v1538 = vsel %vm1522, 1, 0
    %v1539 = vsel %vm1523, 1, 0
    %v1540 = vsel %vm1524, 1, 0
    %v1541 = vcvt.s32.f32 %v1525
    %v1542 = vcvt.s32.f32 %v1526
    %v1543 = vcvt.s32.f32 %v1527
    %v1544 = vcvt.s32.f32 %v1528
    %v1545 = vcvt.s32.f32 %v1529
    %v1546 = vcvt.s32.f32 %v1530
    %v1547 = vcvt.s32.f32 %v1531
    %v1548 = vcvt.s32.f32 %v1532
    %v1549 = vcvt.s32.f32 %v1533
    %v1550 = vcvt.s32.f32 %v1534
    %v1551 = vcvt.s32.f32 %v1535
    %v1552 = vcvt.s32.f32 %v1536
    %v1553 = vcvt.s32.f32 %v1537
    %v1554 = vcvt.s32.f32 %v1538
    %v1555 = vcvt.s32.f32 %v1539
    %v1556 = vcvt.s32.f32 %v1540
    %v1558 = vsel %vm266, %v1541, 0
    %v1561 = vsel %vm266, %v1542, 0
    %v1564 = vsel %vm266, %v1543, 0
    %v1567 = vsel %vm266, %v1544, 0
    %v1570 = vsel %vm266, %v1545, 0
    %v1573 = vsel %vm266, %v1546, 0
    %v1576 = vsel %vm266, %v1547, 0
    %v1579 = vsel %vm266, %v1548, 0
    %v1582 = vsel %vm266, %v1549, 0
    %v1585 = vsel %vm266, %v1550, 0
    %v1588 = vsel %vm266, %v1551, 0
    %v1591 = vsel %vm266, %v1552, 0
    %v1594 = vsel %vm266, %v1553, 0
    %v1597 = vsel %vm266, %v1554, 0
    %v1600 = vsel %vm266, %v1555, 0
    %v1603 = vsel %vm266, %v1556, 0
    %1605 = vmatprep.subr.mxu0 0.0
    %1606 = vmatpush1.msra.mxu0 %v20
    %1607 = vmatprep.subr.mxu0 0.0
    %1608 = vmatpush1.msra.mxu0 %v21
    %1609 = vmatprep.subr.mxu0 0.0
    %1610 = vmatpush1.msra.mxu0 0.0
    %1611 = vmatprep.subr.mxu0 0.0
    %1612 = vmatpush1.msra.mxu0 0.0
    %1613 = vmatprep.subr.mxu0 0.0
    %1614 = vmatpush1.msra.mxu0 0.0
    %1615 = vmatprep.subr.mxu0 0.0
    %1616 = vmatpush1.msra.mxu0 0.0
    %1617 = vmatprep.subr.mxu0 0.0
    %1618 = vmatpush1.msra.mxu0 0.0
    %1619 = vmatprep.subr.mxu0 0.0
    %1620 = vmatpush1.msra.mxu0 0.0
    %1621 = vmatprep.subr.mxu0 0.0
    %1622 = vmatpush1.msra.mxu0 0.0
    %1623 = vmatprep.subr.mxu0 0.0
    %1624 = vmatpush1.msra.mxu0 0.0
    %1625 = vmatprep.subr.mxu0 0.0
    %1626 = vmatpush1.msra.mxu0 0.0
    %1627 = vmatprep.subr.mxu0 0.0
    %1628 = vmatpush1.msra.mxu0 0.0
    %1629 = vmatprep.subr.mxu0 0.0
    %1630 = vmatpush1.msra.mxu0 0.0
    %1631 = vmatprep.subr.mxu0 0.0
    %1632 = vmatpush1.msra.mxu0 0.0
    %1633 = vmatprep.subr.mxu0 0.0
    %1634 = vmatpush1.msra.mxu0 0.0
    %1635 = vmatprep.subr.mxu0 0.0
    %1636 = vmatpush1.msra.mxu0 0.0
    %1637 = vmatprep.subr.mxu0 0.0
    %1638 = vmatpush1.msra.mxu0 0.0
    %1639 = vmatprep.subr.mxu0 0.0
    %1640 = vmatpush1.msra.mxu0 0.0
    %1641 = vmatprep.subr.mxu0 0.0
    %1642 = vmatpush1.msra.mxu0 0.0
    %1643 = vmatprep.subr.mxu0 0.0
    %1644 = vmatpush1.msra.mxu0 0.0
    %1645 = vmatprep.subr.mxu0 0.0
    %1646 = vmatpush1.msra.mxu0 0.0
    %1647 = vmatprep.subr.mxu0 0.0
    %1648 = vmatpush1.msra.mxu0 0.0
    %1649 = vmatprep.subr.mxu0 0.0
    %1650 = vmatpush1.msra.mxu0 0.0
    %1651 = vmatprep.subr.mxu0 0.0
    %1652 = vmatpush1.msra.mxu0 0.0
    %1653 = vmatprep.subr.mxu0 0.0
    %1654 = vmatpush1.msra.mxu0 0.0
    %1655 = vmatprep.subr.mxu0 0.0
    %1656 = vmatpush1.msra.mxu0 0.0
    %1657 = vmatprep.subr.mxu0 0.0
    %1658 = vmatpush1.msra.mxu0 0.0
    %1659 = vmatprep.subr.mxu0 0.0
    %1660 = vmatpush1.msra.mxu0 0.0
    %1661 = vmatprep.subr.mxu0 0.0
    %1662 = vmatpush1.msra.mxu0 0.0
    %1663 = vmatprep.subr.mxu0 0.0
    %1664 = vmatpush1.msra.mxu0 0.0
    %1665 = vmatprep.subr.mxu0 0.0
    %1666 = vmatpush1.msra.mxu0 0.0
    %1667 = vmatprep.subr.mxu0 0.0
    %1668 = vmatpush1.msra.mxu0 0.0
    %1669 = vmatprep.mubr.f32.mxu0 0.0
    %1670 = vmatmul.mubr.f32.gmra.mrb[0].mxu0 %v1558
    %v1671 = vpop.f32.mrb[0].mxu0
    %v1672 = vadd.f32 0.0, %v1671
    %v1673 = vpop.f32.mrb[0].mxu0
    %1674 = vmatprep.mubr.f32.mxu0 0.0
    %1675 = vmatmul.mubr.f32.gmra.mrb[0].mxu0 %v1561
    %v1676 = vpop.f32.mrb[0].mxu0
    %v1677 = vadd.f32 0.0, %v1676
    %v1678 = vpop.f32.mrb[0].mxu0
    %1679 = vmatprep.mubr.f32.mxu0 0.0
    %1680 = vmatmul.mubr.f32.gmra.mrb[0].mxu0 %v1564
    %v1681 = vpop.f32.mrb[0].mxu0
    %v1682 = vadd.f32 0.0, %v1681
    %v1683 = vpop.f32.mrb[0].mxu0
    %1684 = vmatprep.mubr.f32.mxu0 0.0
    %1685 = vmatmul.mubr.f32.gmra.mrb[0].mxu0 %v1567
    %v1686 = vpop.f32.mrb[0].mxu0
    %v1687 = vadd.f32 0.0, %v1686
    %v1688 = vpop.f32.mrb[0].mxu0
    %1689 = vmatprep.mubr.f32.mxu0 0.0
    %1690 = vmatmul.mubr.f32.gmra.mrb[0].mxu0 %v1570
    %v1691 = vpop.f32.mrb[0].mxu0
    %v1692 = vadd.f32 0.0, %v1691
    %v1693 = vpop.f32.mrb[0].mxu0
    %1694 = vmatprep.mubr.f32.mxu0 0.0
    %1695 = vmatmul.mubr.f32.gmra.mrb[0].mxu0 %v1573
    %v1696 = vpop.f32.mrb[0].mxu0
    %v1697 = vadd.f32 0.0, %v1696
    %v1698 = vpop.f32.mrb[0].mxu0
    %1699 = vmatprep.mubr.f32.mxu0 0.0
    %1700 = vmatmul.mubr.f32.gmra.mrb[0].mxu0 %v1576
    %v1701 = vpop.f32.mrb[0].mxu0
    %v1702 = vadd.f32 0.0, %v1701
    %v1703 = vpop.f32.mrb[0].mxu0
    %1704 = vmatprep.mubr.f32.mxu0 0.0
    %1705 = vmatmul.mubr.f32.gmra.mrb[0].mxu0 %v1579
    %v1706 = vpop.f32.mrb[0].mxu0
    %v1707 = vadd.f32 0.0, %v1706
    %v1708 = vpop.f32.mrb[0].mxu0
    %1709 = vmatprep.mubr.f32.mxu0 0.0
    %1710 = vmatmul.mubr.f32.gmra.mrb[0].mxu0 %v1582
    %v1711 = vpop.f32.mrb[0].mxu0
    %v1712 = vadd.f32 0.0, %v1711
    %v1713 = vpop.f32.mrb[0].mxu0
    %1714 = vmatprep.mubr.f32.mxu0 0.0
    %1715 = vmatmul.mubr.f32.gmra.mrb[0].mxu0 %v1585
    %v1716 = vpop.f32.mrb[0].mxu0
    %v1717 = vadd.f32 0.0, %v1716
    %v1718 = vpop.f32.mrb[0].mxu0
    %1719 = vmatprep.mubr.f32.mxu0 0.0
    %1720 = vmatmul.mubr.f32.gmra.mrb[0].mxu0 %v1588
    %v1721 = vpop.f32.mrb[0].mxu0
    %v1722 = vadd.f32 0.0, %v1721
    %v1723 = vpop.f32.mrb[0].mxu0
    %1724 = vmatprep.mubr.f32.mxu0 0.0
    %1725 = vmatmul.mubr.f32.gmra.mrb[0].mxu0 %v1591
    %v1726 = vpop.f32.mrb[0].mxu0
    %v1727 = vadd.f32 0.0, %v1726
    %v1728 = vpop.f32.mrb[0].mxu0
    %1729 = vmatprep.mubr.f32.mxu0 0.0
    %1730 = vmatmul.mubr.f32.gmra.mrb[0].mxu0 %v1594
    %v1731 = vpop.f32.mrb[0].mxu0
    %v1732 = vadd.f32 0.0, %v1731
    %v1733 = vpop.f32.mrb[0].mxu0
    %1734 = vmatprep.mubr.f32.mxu0 0.0
    %1735 = vmatmul.mubr.f32.gmra.mrb[0].mxu0 %v1597
    %v1736 = vpop.f32.mrb[0].mxu0
    %v1737 = vadd.f32 0.0, %v1736
    %v1738 = vpop.f32.mrb[0].mxu0
    %1739 = vmatprep.mubr.f32.mxu0 0.0
    %1740 = vmatmul.mubr.f32.gmra.mrb[0].mxu0 %v1600
    %v1741 = vpop.f32.mrb[0].mxu0
    %v1742 = vadd.f32 0.0, %v1741
    %v1743 = vpop.f32.mrb[0].mxu0
    %1744 = vmatprep.mubr.f32.mxu0 0.0
    %1745 = vmatmul.mubr.f32.gmra.mrb[0].mxu0 %v1603
    %v1746 = vpop.f32.mrb[0].mxu0
    %v1747 = vadd.f32 0.0, %v1746
    %v1748 = vpop.f32.mrb[0].mxu0
    %1749 = vdwg.mxu0
    %v1750 = vadd.f32 %v828, %v1672
    %v1751 = vadd.f32 %v829, %v1677
    %v1752 = vadd.f32 %v830, %v1682
    %v1753 = vadd.f32 %v831, %v1687
    %v1754 = vadd.f32 %v832, %v1692
    %v1755 = vadd.f32 %v833, %v1697
    %v1756 = vadd.f32 %v834, %v1702
    %v1757 = vadd.f32 %v835, %v1707
    %v1758 = vadd.f32 %v836, %v1712
    %v1759 = vadd.f32 %v837, %v1717
    %v1760 = vadd.f32 %v838, %v1722
    %v1761 = vadd.f32 %v839, %v1727
    %v1762 = vadd.f32 %v840, %v1732
    %v1763 = vadd.f32 %v841, %v1737
    %v1764 = vadd.f32 %v842, %v1742
    %v1765 = vadd.f32 %v843, %v1747
    %v1766 = vsub.f32 %v844, %v1672
    %v1767 = vsub.f32 %v845, %v1677
    %v1768 = vsub.f32 %v846, %v1682
    %v1769 = vsub.f32 %v847, %v1687
    %v1770 = vsub.f32 %v848, %v1692
    %v1771 = vsub.f32 %v849, %v1697
    %v1772 = vsub.f32 %v850, %v1702
    %v1773 = vsub.f32 %v851, %v1707
    %v1774 = vsub.f32 %v852, %v1712
    %v1775 = vsub.f32 %v853, %v1717
    %v1776 = vsub.f32 %v854, %v1722
    %v1777 = vsub.f32 %v855, %v1727
    %v1778 = vsub.f32 %v856, %v1732
    %v1779 = vsub.f32 %v857, %v1737
    %v1780 = vsub.f32 %v858, %v1742
    %v1781 = vsub.f32 %v859, %v1747
    %v1782 = vlaneseq
    %v1783 = vshrl.u32 %v1782, 7
    %v1784 = vsub.s32 %v29, %v1783
    %v1785 = vrot.slane %v1283, %v1784
    %v1786 = vlaneseq
    %v1787 = vshrl.u32 %v1786, 7
    %v1788 = vsub.s32 %v864, %v1787
    %v1789 = vrot.slane %v1298, %v1788
    %v1790 = vsel %vm869, %v1789, %v1785
    %v1791 = vlaneseq
    %v1792 = vshrl.u32 %v1791, 7
    %v1793 = vsub.s32 %v871, %v1792
    %v1794 = vrot.slane %v1313, %v1793
    %v1795 = vsel %vm876, %v1794, %v1790
    %v1796 = vlaneseq
    %v1797 = vshrl.u32 %v1796, 7
    %v1798 = vsub.s32 %v878, %v1797
    %v1799 = vrot.slane %v1328, %v1798
    %v1800 = vsel %vm883, %v1799, %v1795
    %v1801 = vlaneseq
    %v1802 = vshrl.u32 %v1801, 7
    %v1803 = vsub.s32 %v885, %v1802
    %v1804 = vrot.slane %v1343, %v1803
    %v1805 = vsel %vm890, %v1804, %v1800
    %v1806 = vlaneseq
    %v1807 = vshrl.u32 %v1806, 7
    %v1808 = vsub.s32 %v892, %v1807
    %v1809 = vrot.slane %v1358, %v1808
    %v1810 = vsel %vm897, %v1809, %v1805
    %v1811 = vlaneseq
    %v1812 = vshrl.u32 %v1811, 7
    %v1813 = vsub.s32 %v899, %v1812
    %v1814 = vrot.slane %v1373, %v1813
    %v1815 = vsel %vm904, %v1814, %v1810
    %v1816 = vlaneseq
    %v1817 = vshrl.u32 %v1816, 7
    %v1818 = vsub.s32 %v906, %v1817
    %v1819 = vrot.slane %v1388, %v1818
    %v1820 = vsel %vm911, %v1819, %v1815
    %v1821 = vlaneseq
    %v1822 = vshrl.u32 %v1821, 7
    %v1823 = vsub.s32 %v913, %v1822
    %v1824 = vrot.slane %v1403, %v1823
    %v1825 = vsel %vm918, %v1824, %v1820
    %v1826 = vlaneseq
    %v1827 = vshrl.u32 %v1826, 7
    %v1828 = vsub.s32 %v920, %v1827
    %v1829 = vrot.slane %v1418, %v1828
    %v1830 = vsel %vm925, %v1829, %v1825
    %v1831 = vlaneseq
    %v1832 = vshrl.u32 %v1831, 7
    %v1833 = vsub.s32 %v927, %v1832
    %v1834 = vrot.slane %v1433, %v1833
    %v1835 = vsel %vm932, %v1834, %v1830
    %v1836 = vlaneseq
    %v1837 = vshrl.u32 %v1836, 7
    %v1838 = vsub.s32 %v934, %v1837
    %v1839 = vrot.slane %v1448, %v1838
    %v1840 = vsel %vm939, %v1839, %v1835
    %v1841 = vlaneseq
    %v1842 = vshrl.u32 %v1841, 7
    %v1843 = vsub.s32 %v941, %v1842
    %v1844 = vrot.slane %v1463, %v1843
    %v1845 = vsel %vm946, %v1844, %v1840
    %v1846 = vlaneseq
    %v1847 = vshrl.u32 %v1846, 7
    %v1848 = vsub.s32 %v948, %v1847
    %v1849 = vrot.slane %v1478, %v1848
    %v1850 = vsel %vm953, %v1849, %v1845
    %v1851 = vlaneseq
    %v1852 = vshrl.u32 %v1851, 7
    %v1853 = vsub.s32 %v955, %v1852
    %v1854 = vrot.slane %v1493, %v1853
    %v1855 = vsel %vm960, %v1854, %v1850
    %v1856 = vlaneseq
    %v1857 = vshrl.u32 %v1856, 7
    %v1858 = vsub.s32 %v962, %v1857
    %v1859 = vrot.slane %v1508, %v1858
    %v1860 = vsel %vm967, %v1859, %v1855
    %1861 = vst [vmem:[#allocation2 + $0x1] sm:$0x1] %v1860
    %v1863 = vsel %vm46, %v1766, 0
    %v1866 = vsel %vm46, %v1767, 0
    %v1869 = vsel %vm46, %v1768, 0
    %v1872 = vsel %vm46, %v1769, 0
    %v1875 = vsel %vm46, %v1770, 0
    %v1878 = vsel %vm46, %v1771, 0
    %v1881 = vsel %vm46, %v1772, 0
    %v1884 = vsel %vm46, %v1773, 0
    %v1887 = vsel %vm46, %v1774, 0
    %v1890 = vsel %vm46, %v1775, 0
    %v1893 = vsel %vm46, %v1776, 0
    %v1896 = vsel %vm46, %v1777, 0
    %v1899 = vsel %vm46, %v1778, 0
    %v1902 = vsel %vm46, %v1779, 0
    %v1905 = vsel %vm46, %v1780, 0
    %v1908 = vsel %vm46, %v1781, 0
    %v1911 = vsel %vm46, %v23, 0
    %v1914 = vsel %vm46, %v24, 0
    %1916 = vmatprep.subr.mxu0 0.0
    %1917 = vmatpush1.xpose.msra.mxu0 %v1911
    %1918 = vmatprep.subr.mxu0 0.0
    %1919 = vmatpush1.xpose.msra.mxu0 %v1914
    %1920 = vmatprep.subr.mxu0 0.0
    %1921 = vmatpush1.xpose.msra.mxu0 0.0
    %1922 = vmatprep.subr.mxu0 0.0
    %1923 = vmatpush1.xpose.msra.mxu0 0.0
    %1924 = vmatprep.subr.mxu0 0.0
    %1925 = vmatpush1.xpose.msra.mxu0 0.0
    %1926 = vmatprep.subr.mxu0 0.0
    %1927 = vmatpush1.xpose.msra.mxu0 0.0
    %1928 = vmatprep.subr.mxu0 0.0
    %1929 = vmatpush1.xpose.msra.mxu0 0.0
    %1930 = vmatprep.subr.mxu0 0.0
    %1931 = vmatpush1.xpose.msra.mxu0 0.0
    %1932 = vmatprep.subr.mxu0 0.0
    %1933 = vmatpush1.xpose.msra.mxu0 0.0
    %1934 = vmatprep.subr.mxu0 0.0
    %1935 = vmatpush1.xpose.msra.mxu0 0.0
    %1936 = vmatprep.subr.mxu0 0.0
    %1937 = vmatpush1.xpose.msra.mxu0 0.0
    %1938 = vmatprep.subr.mxu0 0.0
    %1939 = vmatpush1.xpose.msra.mxu0 0.0
    %1940 = vmatprep.subr.mxu0 0.0
    %1941 = vmatpush1.xpose.msra.mxu0 0.0
    %1942 = vmatprep.subr.mxu0 0.0
    %1943 = vmatpush1.xpose.msra.mxu0 0.0
    %1944 = vmatprep.subr.mxu0 0.0
    %1945 = vmatpush1.xpose.msra.mxu0 0.0
    %1946 = vmatprep.subr.mxu0 0.0
    %1947 = vmatpush1.xpose.msra.mxu0 0.0
    %1948 = vmatprep.subr.mxu0 0.0
    %1949 = vmatpush1.xpose.msra.mxu0 0.0
    %1950 = vmatprep.subr.mxu0 0.0
    %1951 = vmatpush1.xpose.msra.mxu0 0.0
    %1952 = vmatprep.subr.mxu0 0.0
    %1953 = vmatpush1.xpose.msra.mxu0 0.0
    %1954 = vmatprep.subr.mxu0 0.0
    %1955 = vmatpush1.xpose.msra.mxu0 0.0
    %1956 = vmatprep.subr.mxu0 0.0
    %1957 = vmatpush1.xpose.msra.mxu0 0.0
    %1958 = vmatprep.subr.mxu0 0.0
    %1959 = vmatpush1.xpose.msra.mxu0 0.0
    %1960 = vmatprep.subr.mxu0 0.0
    %1961 = vmatpush1.xpose.msra.mxu0 0.0
    %1962 = vmatprep.subr.mxu0 0.0
    %1963 = vmatpush1.xpose.msra.mxu0 0.0
    %1964 = vmatprep.subr.mxu0 0.0
    %1965 = vmatpush1.xpose.msra.mxu0 0.0
    %1966 = vmatprep.subr.mxu0 0.0
    %1967 = vmatpush1.xpose.msra.mxu0 0.0
    %1968 = vmatprep.subr.mxu0 0.0
    %1969 = vmatpush1.xpose.msra.mxu0 0.0
    %1970 = vmatprep.subr.mxu0 0.0
    %1971 = vmatpush1.xpose.msra.mxu0 0.0
    %1972 = vmatprep.subr.mxu0 0.0
    %1973 = vmatpush1.xpose.msra.mxu0 0.0
    %1974 = vmatprep.subr.mxu0 0.0
    %1975 = vmatpush1.xpose.msra.mxu0 0.0
    %1976 = vmatprep.subr.mxu0 0.0
    %1977 = vmatpush1.xpose.msra.mxu0 0.0
    %1978 = vmatprep.subr.mxu0 0.0
    %1979 = vmatpush1.xpose.msra.mxu0 0.0
    %1980 = vmatprep.mubr.f32.mxu0 0.0
    %1981 = vmatmul.mubr.f32.gmra.mrb[0].mxu0 %v1863
    %v1982 = vpop.f32.mrb[0].mxu0
    %v1983 = vadd.f32 0.0, %v1982
    %v1984 = vpop.f32.mrb[0].mxu0
    %1985 = vmatprep.mubr.f32.mxu0 0.0
    %1986 = vmatmul.mubr.f32.gmra.mrb[0].mxu0 %v1866
    %v1987 = vpop.f32.mrb[0].mxu0
    %v1988 = vadd.f32 0.0, %v1987
    %v1989 = vpop.f32.mrb[0].mxu0
    %1990 = vmatprep.mubr.f32.mxu0 0.0
    %1991 = vmatmul.mubr.f32.gmra.mrb[0].mxu0 %v1869
    %v1992 = vpop.f32.mrb[0].mxu0
    %v1993 = vadd.f32 0.0, %v1992
    %v1994 = vpop.f32.mrb[0].mxu0
    %1995 = vmatprep.mubr.f32.mxu0 0.0
    %1996 = vmatmul.mubr.f32.gmra.mrb[0].mxu0 %v1872
    %v1997 = vpop.f32.mrb[0].mxu0
    %v1998 = vadd.f32 0.0, %v1997
    %v1999 = vpop.f32.mrb[0].mxu0
    %2000 = vmatprep.mubr.f32.mxu0 0.0
    %2001 = vmatmul.mubr.f32.gmra.mrb[0].mxu0 %v1875
    %v2002 = vpop.f32.mrb[0].mxu0
    %v2003 = vadd.f32 0.0, %v2002
    %v2004 = vpop.f32.mrb[0].mxu0
    %2005 = vmatprep.mubr.f32.mxu0 0.0
    %2006 = vmatmul.mubr.f32.gmra.mrb[0].mxu0 %v1878
    %v2007 = vpop.f32.mrb[0].mxu0
    %v2008 = vadd.f32 0.0, %v2007
    %v2009 = vpop.f32.mrb[0].mxu0
    %2010 = vmatprep.mubr.f32.mxu0 0.0
    %2011 = vmatmul.mubr.f32.gmra.mrb[0].mxu0 %v1881
    %v2012 = vpop.f32.mrb[0].mxu0
    %v2013 = vadd.f32 0.0, %v2012
    %v2014 = vpop.f32.mrb[0].mxu0
    %2015 = vmatprep.mubr.f32.mxu0 0.0
    %2016 = vmatmul.mubr.f32.gmra.mrb[0].mxu0 %v1884
    %v2017 = vpop.f32.mrb[0].mxu0
    %v2018 = vadd.f32 0.0, %v2017
    %v2019 = vpop.f32.mrb[0].mxu0
    %2020 = vmatprep.mubr.f32.mxu0 0.0
    %2021 = vmatmul.mubr.f32.gmra.mrb[0].mxu0 %v1887
    %v2022 = vpop.f32.mrb[0].mxu0
    %v2023 = vadd.f32 0.0, %v2022
    %v2024 = vpop.f32.mrb[0].mxu0
    %2025 = vmatprep.mubr.f32.mxu0 0.0
    %2026 = vmatmul.mubr.f32.gmra.mrb[0].mxu0 %v1890
    %v2027 = vpop.f32.mrb[0].mxu0
    %v2028 = vadd.f32 0.0, %v2027
    %v2029 = vpop.f32.mrb[0].mxu0
    %2030 = vmatprep.mubr.f32.mxu0 0.0
    %2031 = vmatmul.mubr.f32.gmra.mrb[0].mxu0 %v1893
    %v2032 = vpop.f32.mrb[0].mxu0
    %v2033 = vadd.f32 0.0, %v2032
    %v2034 = vpop.f32.mrb[0].mxu0
    %2035 = vmatprep.mubr.f32.mxu0 0.0
    %2036 = vmatmul.mubr.f32.gmra.mrb[0].mxu0 %v1896
    %v2037 = vpop.f32.mrb[0].mxu0
    %v2038 = vadd.f32 0.0, %v2037
    %v2039 = vpop.f32.mrb[0].mxu0
    %2040 = vmatprep.mubr.f32.mxu0 0.0
    %2041 = vmatmul.mubr.f32.gmra.mrb[0].mxu0 %v1899
    %v2042 = vpop.f32.mrb[0].mxu0
    %v2043 = vadd.f32 0.0, %v2042
    %v2044 = vpop.f32.mrb[0].mxu0
    %2045 = vmatprep.mubr.f32.mxu0 0.0
    %2046 = vmatmul.mubr.f32.gmra.mrb[0].mxu0 %v1902
    %v2047 = vpop.f32.mrb[0].mxu0
    %v2048 = vadd.f32 0.0, %v2047
    %v2049 = vpop.f32.mrb[0].mxu0
    %2050 = vmatprep.mubr.f32.mxu0 0.0
    %2051 = vmatmul.mubr.f32.gmra.mrb[0].mxu0 %v1905
    %v2052 = vpop.f32.mrb[0].mxu0
    %v2053 = vadd.f32 0.0, %v2052
    %v2054 = vpop.f32.mrb[0].mxu0
    %2055 = vmatprep.mubr.f32.mxu0 0.0
    %2056 = vmatmul.mubr.f32.gmra.mrb[0].mxu0 %v1908
    %v2057 = vpop.f32.mrb[0].mxu0
    %v2058 = vadd.f32 0.0, %v2057
    %v2059 = vpop.f32.mrb[0].mxu0
    %2060 = vdwg.mxu0
    %v2061 = vlaneseq
    %v2062 = vshrl.u32 %v2061, 7
    %v2063 = vsub.s32 0, %v2062
    %v2064 = vrot.slane %v27, %v2063
    %v2065 = vsub.f32 %v2064, %v1983
    %v2066 = vsub.f32 %v2064, %v1988
    %v2067 = vsub.f32 %v2064, %v1993
    %v2068 = vsub.f32 %v2064, %v1998
    %v2069 = vsub.f32 %v2064, %v2003
    %v2070 = vsub.f32 %v2064, %v2008
    %v2071 = vsub.f32 %v2064, %v2013
    %v2072 = vsub.f32 %v2064, %v2018
    %v2073 = vsub.f32 %v2064, %v2023
    %v2074 = vsub.f32 %v2064, %v2028
    %v2075 = vsub.f32 %v2064, %v2033
    %v2076 = vsub.f32 %v2064, %v2038
    %v2077 = vsub.f32 %v2064, %v2043
    %v2078 = vsub.f32 %v2064, %v2048
    %v2079 = vsub.f32 %v2064, %v2053
    %v2080 = vsub.f32 %v2064, %v2058
    %v2081 = vsel %vm266, %v2065, inf
    %2082 = vmin.xlane.f32.xlu0 %v2081
    %v2083 = vpop.xlane.xlu0 %2082
    %v2084 = vsel %vm266, %v2066, inf
    %2085 = vmin.xlane.f32.xlu0 %v2084
    %v2086 = vpop.xlane.xlu0 %2085
    %v2087 = vsel %vm266, %v2067, inf
    %2088 = vmin.xlane.f32.xlu0 %v2087
    %v2089 = vpop.xlane.xlu0 %2088
    %v2090 = vsel %vm266, %v2068, inf
    %2091 = vmin.xlane.f32.xlu0 %v2090
    %v2092 = vpop.xlane.xlu0 %2091
    %v2093 = vsel %vm266, %v2069, inf
    %2094 = vmin.xlane.f32.xlu0 %v2093
    %v2095 = vpop.xlane.xlu0 %2094
    %v2096 = vsel %vm266, %v2070, inf
    %2097 = vmin.xlane.f32.xlu0 %v2096
    %v2098 = vpop.xlane.xlu0 %2097
    %v2099 = vsel %vm266, %v2071, inf
    %2100 = vmin.xlane.f32.xlu0 %v2099
    %v2101 = vpop.xlane.xlu0 %2100
    %v2102 = vsel %vm266, %v2072, inf
    %2103 = vmin.xlane.f32.xlu0 %v2102
    %v2104 = vpop.xlane.xlu0 %2103
    %v2105 = vsel %vm266, %v2073, inf
    %2106 = vmin.xlane.f32.xlu0 %v2105
    %v2107 = vpop.xlane.xlu0 %2106
    %v2108 = vsel %vm266, %v2074, inf
    %2109 = vmin.xlane.f32.xlu0 %v2108
    %v2110 = vpop.xlane.xlu0 %2109
    %v2111 = vsel %vm266, %v2075, inf
    %2112 = vmin.xlane.f32.xlu0 %v2111
    %v2113 = vpop.xlane.xlu0 %2112
    %v2114 = vsel %vm266, %v2076, inf
    %2115 = vmin.xlane.f32.xlu0 %v2114
    %v2116 = vpop.xlane.xlu0 %2115
    %v2117 = vsel %vm266, %v2077, inf
    %2118 = vmin.xlane.f32.xlu0 %v2117
    %v2119 = vpop.xlane.xlu0 %2118
    %v2120 = vsel %vm266, %v2078, inf
    %2121 = vmin.xlane.f32.xlu0 %v2120
    %v2122 = vpop.xlane.xlu0 %2121
    %v2123 = vsel %vm266, %v2079, inf
    %2124 = vmin.xlane.f32.xlu0 %v2123
    %v2125 = vpop.xlane.xlu0 %2124
    %v2126 = vsel %vm266, %v2080, inf
    %2127 = vmin.xlane.f32.xlu0 %v2126
    %v2128 = vpop.xlane.xlu0 %2127
    %vm2129 = vcmp.eq.f32.partialorder %v2065, %v2083
    %vm2130 = vcmp.eq.f32.partialorder %v2066, %v2086
    %vm2131 = vcmp.eq.f32.partialorder %v2067, %v2089
    %vm2132 = vcmp.eq.f32.partialorder %v2068, %v2092
    %vm2133 = vcmp.eq.f32.partialorder %v2069, %v2095
    %vm2134 = vcmp.eq.f32.partialorder %v2070, %v2098
    %vm2135 = vcmp.eq.f32.partialorder %v2071, %v2101
    %vm2136 = vcmp.eq.f32.partialorder %v2072, %v2104
    %vm2137 = vcmp.eq.f32.partialorder %v2073, %v2107
    %vm2138 = vcmp.eq.f32.partialorder %v2074, %v2110
    %vm2139 = vcmp.eq.f32.partialorder %v2075, %v2113
    %vm2140 = vcmp.eq.f32.partialorder %v2076, %v2116
    %vm2141 = vcmp.eq.f32.partialorder %v2077, %v2119
    %vm2142 = vcmp.eq.f32.partialorder %v2078, %v2122
    %vm2143 = vcmp.eq.f32.partialorder %v2079, %v2125
    %vm2144 = vcmp.eq.f32.partialorder %v2080, %v2128
    %v2145 = vsel %vm2129, %v29, 16
    %v2146 = vsel %vm2130, %v29, 16
    %v2147 = vsel %vm2131, %v29, 16
    %v2148 = vsel %vm2132, %v29, 16
    %v2149 = vsel %vm2133, %v29, 16
    %v2150 = vsel %vm2134, %v29, 16
    %v2151 = vsel %vm2135, %v29, 16
    %v2152 = vsel %vm2136, %v29, 16
    %v2153 = vsel %vm2137, %v29, 16
    %v2154 = vsel %vm2138, %v29, 16
    %v2155 = vsel %vm2139, %v29, 16
    %v2156 = vsel %vm2140, %v29, 16
    %v2157 = vsel %vm2141, %v29, 16
    %v2158 = vsel %vm2142, %v29, 16
    %v2159 = vsel %vm2143, %v29, 16
    %v2160 = vsel %vm2144, %v29, 16
    %v2161 = vsel %vm266, %v2145, 2147483647
    %v2162 = vand.u32 %v2161, 65535
    %v2163 = vshra.s32 %v2161, 16
    %v2164 = vcvt.s32.f32 %v2162
    %v2165 = vcvt.s32.f32 %v2163
    %2166 = vmin.xlane.f32.xlu0 %v2165
    %v2167 = vpop.xlane.xlu0 %2166
    %vm2168 = vcmp.eq.f32.partialorder %v2165, %v2167
    %v2169 = vsel %vm2168, %v2164, inf
    %2170 = vmin.xlane.f32.xlu0 %v2169
    %v2171 = vpop.xlane.xlu0 %2170
    %v2172 = vcvt.f32.s32 %v2171
    %v2173 = vcvt.f32.s32 %v2167
    %v2174 = vshll.u32 %v2173, 16
    %v2175 = vadd.s32 %v2174, %v2172
    %v2176 = vsel %vm266, %v2146, 2147483647
    %v2177 = vand.u32 %v2176, 65535
    %v2178 = vshra.s32 %v2176, 16
    %v2179 = vcvt.s32.f32 %v2177
    %v2180 = vcvt.s32.f32 %v2178
    %2181 = vmin.xlane.f32.xlu0 %v2180
    %v2182 = vpop.xlane.xlu0 %2181
    %vm2183 = vcmp.eq.f32.partialorder %v2180, %v2182
    %v2184 = vsel %vm2183, %v2179, inf
    %2185 = vmin.xlane.f32.xlu0 %v2184
    %v2186 = vpop.xlane.xlu0 %2185
    %v2187 = vcvt.f32.s32 %v2186
    %v2188 = vcvt.f32.s32 %v2182
    %v2189 = vshll.u32 %v2188, 16
    %v2190 = vadd.s32 %v2189, %v2187
    %v2191 = vsel %vm266, %v2147, 2147483647
    %v2192 = vand.u32 %v2191, 65535
    %v2193 = vshra.s32 %v2191, 16
    %v2194 = vcvt.s32.f32 %v2192
    %v2195 = vcvt.s32.f32 %v2193
    %2196 = vmin.xlane.f32.xlu0 %v2195
    %v2197 = vpop.xlane.xlu0 %2196
    %vm2198 = vcmp.eq.f32.partialorder %v2195, %v2197
    %v2199 = vsel %vm2198, %v2194, inf
    %2200 = vmin.xlane.f32.xlu0 %v2199
    %v2201 = vpop.xlane.xlu0 %2200
    %v2202 = vcvt.f32.s32 %v2201
    %v2203 = vcvt.f32.s32 %v2197
    %v2204 = vshll.u32 %v2203, 16
    %v2205 = vadd.s32 %v2204, %v2202
    %v2206 = vsel %vm266, %v2148, 2147483647
    %v2207 = vand.u32 %v2206, 65535
    %v2208 = vshra.s32 %v2206, 16
    %v2209 = vcvt.s32.f32 %v2207
    %v2210 = vcvt.s32.f32 %v2208
    %2211 = vmin.xlane.f32.xlu0 %v2210
    %v2212 = vpop.xlane.xlu0 %2211
    %vm2213 = vcmp.eq.f32.partialorder %v2210, %v2212
    %v2214 = vsel %vm2213, %v2209, inf
    %2215 = vmin.xlane.f32.xlu0 %v2214
    %v2216 = vpop.xlane.xlu0 %2215
    %v2217 = vcvt.f32.s32 %v2216
    %v2218 = vcvt.f32.s32 %v2212
    %v2219 = vshll.u32 %v2218, 16
    %v2220 = vadd.s32 %v2219, %v2217
    %v2221 = vsel %vm266, %v2149, 2147483647
    %v2222 = vand.u32 %v2221, 65535
    %v2223 = vshra.s32 %v2221, 16
    %v2224 = vcvt.s32.f32 %v2222
    %v2225 = vcvt.s32.f32 %v2223
    %2226 = vmin.xlane.f32.xlu0 %v2225
    %v2227 = vpop.xlane.xlu0 %2226
    %vm2228 = vcmp.eq.f32.partialorder %v2225, %v2227
    %v2229 = vsel %vm2228, %v2224, inf
    %2230 = vmin.xlane.f32.xlu0 %v2229
    %v2231 = vpop.xlane.xlu0 %2230
    %v2232 = vcvt.f32.s32 %v2231
    %v2233 = vcvt.f32.s32 %v2227
    %v2234 = vshll.u32 %v2233, 16
    %v2235 = vadd.s32 %v2234, %v2232
    %v2236 = vsel %vm266, %v2150, 2147483647
    %v2237 = vand.u32 %v2236, 65535
    %v2238 = vshra.s32 %v2236, 16
    %v2239 = vcvt.s32.f32 %v2237
    %v2240 = vcvt.s32.f32 %v2238
    %2241 = vmin.xlane.f32.xlu0 %v2240
    %v2242 = vpop.xlane.xlu0 %2241
    %vm2243 = vcmp.eq.f32.partialorder %v2240, %v2242
    %v2244 = vsel %vm2243, %v2239, inf
    %2245 = vmin.xlane.f32.xlu0 %v2244
    %v2246 = vpop.xlane.xlu0 %2245
    %v2247 = vcvt.f32.s32 %v2246
    %v2248 = vcvt.f32.s32 %v2242
    %v2249 = vshll.u32 %v2248, 16
    %v2250 = vadd.s32 %v2249, %v2247
    %v2251 = vsel %vm266, %v2151, 2147483647
    %v2252 = vand.u32 %v2251, 65535
    %v2253 = vshra.s32 %v2251, 16
    %v2254 = vcvt.s32.f32 %v2252
    %v2255 = vcvt.s32.f32 %v2253
    %2256 = vmin.xlane.f32.xlu0 %v2255
    %v2257 = vpop.xlane.xlu0 %2256
    %vm2258 = vcmp.eq.f32.partialorder %v2255, %v2257
    %v2259 = vsel %vm2258, %v2254, inf
    %2260 = vmin.xlane.f32.xlu0 %v2259
    %v2261 = vpop.xlane.xlu0 %2260
    %v2262 = vcvt.f32.s32 %v2261
    %v2263 = vcvt.f32.s32 %v2257
    %v2264 = vshll.u32 %v2263, 16
    %v2265 = vadd.s32 %v2264, %v2262
    %v2266 = vsel %vm266, %v2152, 2147483647
    %v2267 = vand.u32 %v2266, 65535
    %v2268 = vshra.s32 %v2266, 16
    %v2269 = vcvt.s32.f32 %v2267
    %v2270 = vcvt.s32.f32 %v2268
    %2271 = vmin.xlane.f32.xlu0 %v2270
    %v2272 = vpop.xlane.xlu0 %2271
    %vm2273 = vcmp.eq.f32.partialorder %v2270, %v2272
    %v2274 = vsel %vm2273, %v2269, inf
    %2275 = vmin.xlane.f32.xlu0 %v2274
    %v2276 = vpop.xlane.xlu0 %2275
    %v2277 = vcvt.f32.s32 %v2276
    %v2278 = vcvt.f32.s32 %v2272
    %v2279 = vshll.u32 %v2278, 16
    %v2280 = vadd.s32 %v2279, %v2277
    %v2281 = vsel %vm266, %v2153, 2147483647
    %v2282 = vand.u32 %v2281, 65535
    %v2283 = vshra.s32 %v2281, 16
    %v2284 = vcvt.s32.f32 %v2282
    %v2285 = vcvt.s32.f32 %v2283
    %2286 = vmin.xlane.f32.xlu0 %v2285
    %v2287 = vpop.xlane.xlu0 %2286
    %vm2288 = vcmp.eq.f32.partialorder %v2285, %v2287
    %v2289 = vsel %vm2288, %v2284, inf
    %2290 = vmin.xlane.f32.xlu0 %v2289
    %v2291 = vpop.xlane.xlu0 %2290
    %v2292 = vcvt.f32.s32 %v2291
    %v2293 = vcvt.f32.s32 %v2287
    %v2294 = vshll.u32 %v2293, 16
    %v2295 = vadd.s32 %v2294, %v2292
    %v2296 = vsel %vm266, %v2154, 2147483647
    %v2297 = vand.u32 %v2296, 65535
    %v2298 = vshra.s32 %v2296, 16
    %v2299 = vcvt.s32.f32 %v2297
    %v2300 = vcvt.s32.f32 %v2298
    %2301 = vmin.xlane.f32.xlu0 %v2300
    %v2302 = vpop.xlane.xlu0 %2301
    %vm2303 = vcmp.eq.f32.partialorder %v2300, %v2302
    %v2304 = vsel %vm2303, %v2299, inf
    %2305 = vmin.xlane.f32.xlu0 %v2304
    %v2306 = vpop.xlane.xlu0 %2305
    %v2307 = vcvt.f32.s32 %v2306
    %v2308 = vcvt.f32.s32 %v2302
    %v2309 = vshll.u32 %v2308, 16
    %v2310 = vadd.s32 %v2309, %v2307
    %v2311 = vsel %vm266, %v2155, 2147483647
    %v2312 = vand.u32 %v2311, 65535
    %v2313 = vshra.s32 %v2311, 16
    %v2314 = vcvt.s32.f32 %v2312
    %v2315 = vcvt.s32.f32 %v2313
    %2316 = vmin.xlane.f32.xlu0 %v2315
    %v2317 = vpop.xlane.xlu0 %2316
    %vm2318 = vcmp.eq.f32.partialorder %v2315, %v2317
    %v2319 = vsel %vm2318, %v2314, inf
    %2320 = vmin.xlane.f32.xlu0 %v2319
    %v2321 = vpop.xlane.xlu0 %2320
    %v2322 = vcvt.f32.s32 %v2321
    %v2323 = vcvt.f32.s32 %v2317
    %v2324 = vshll.u32 %v2323, 16
    %v2325 = vadd.s32 %v2324, %v2322
    %v2326 = vsel %vm266, %v2156, 2147483647
    %v2327 = vand.u32 %v2326, 65535
    %v2328 = vshra.s32 %v2326, 16
    %v2329 = vcvt.s32.f32 %v2327
    %v2330 = vcvt.s32.f32 %v2328
    %2331 = vmin.xlane.f32.xlu0 %v2330
    %v2332 = vpop.xlane.xlu0 %2331
    %vm2333 = vcmp.eq.f32.partialorder %v2330, %v2332
    %v2334 = vsel %vm2333, %v2329, inf
    %2335 = vmin.xlane.f32.xlu0 %v2334
    %v2336 = vpop.xlane.xlu0 %2335
    %v2337 = vcvt.f32.s32 %v2336
    %v2338 = vcvt.f32.s32 %v2332
    %v2339 = vshll.u32 %v2338, 16
    %v2340 = vadd.s32 %v2339, %v2337
    %v2341 = vsel %vm266, %v2157, 2147483647
    %v2342 = vand.u32 %v2341, 65535
    %v2343 = vshra.s32 %v2341, 16
    %v2344 = vcvt.s32.f32 %v2342
    %v2345 = vcvt.s32.f32 %v2343
    %2346 = vmin.xlane.f32.xlu0 %v2345
    %v2347 = vpop.xlane.xlu0 %2346
    %vm2348 = vcmp.eq.f32.partialorder %v2345, %v2347
    %v2349 = vsel %vm2348, %v2344, inf
    %2350 = vmin.xlane.f32.xlu0 %v2349
    %v2351 = vpop.xlane.xlu0 %2350
    %v2352 = vcvt.f32.s32 %v2351
    %v2353 = vcvt.f32.s32 %v2347
    %v2354 = vshll.u32 %v2353, 16
    %v2355 = vadd.s32 %v2354, %v2352
    %v2356 = vsel %vm266, %v2158, 2147483647
    %v2357 = vand.u32 %v2356, 65535
    %v2358 = vshra.s32 %v2356, 16
    %v2359 = vcvt.s32.f32 %v2357
    %v2360 = vcvt.s32.f32 %v2358
    %2361 = vmin.xlane.f32.xlu0 %v2360
    %v2362 = vpop.xlane.xlu0 %2361
    %vm2363 = vcmp.eq.f32.partialorder %v2360, %v2362
    %v2364 = vsel %vm2363, %v2359, inf
    %2365 = vmin.xlane.f32.xlu0 %v2364
    %v2366 = vpop.xlane.xlu0 %2365
    %v2367 = vcvt.f32.s32 %v2366
    %v2368 = vcvt.f32.s32 %v2362
    %v2369 = vshll.u32 %v2368, 16
    %v2370 = vadd.s32 %v2369, %v2367
    %v2371 = vsel %vm266, %v2159, 2147483647
    %v2372 = vand.u32 %v2371, 65535
    %v2373 = vshra.s32 %v2371, 16
    %v2374 = vcvt.s32.f32 %v2372
    %v2375 = vcvt.s32.f32 %v2373
    %2376 = vmin.xlane.f32.xlu0 %v2375
    %v2377 = vpop.xlane.xlu0 %2376
    %vm2378 = vcmp.eq.f32.partialorder %v2375, %v2377
    %v2379 = vsel %vm2378, %v2374, inf
    %2380 = vmin.xlane.f32.xlu0 %v2379
    %v2381 = vpop.xlane.xlu0 %2380
    %v2382 = vcvt.f32.s32 %v2381
    %v2383 = vcvt.f32.s32 %v2377
    %v2384 = vshll.u32 %v2383, 16
    %v2385 = vadd.s32 %v2384, %v2382
    %v2386 = vsel %vm266, %v2160, 2147483647
    %v2387 = vand.u32 %v2386, 65535
    %v2388 = vshra.s32 %v2386, 16
    %v2389 = vcvt.s32.f32 %v2387
    %v2390 = vcvt.s32.f32 %v2388
    %2391 = vmin.xlane.f32.xlu0 %v2390
    %v2392 = vpop.xlane.xlu0 %2391
    %vm2393 = vcmp.eq.f32.partialorder %v2390, %v2392
    %v2394 = vsel %vm2393, %v2389, inf
    %2395 = vmin.xlane.f32.xlu0 %v2394
    %v2396 = vpop.xlane.xlu0 %2395
    %v2397 = vcvt.f32.s32 %v2396
    %v2398 = vcvt.f32.s32 %v2392
    %v2399 = vshll.u32 %v2398, 16
    %v2400 = vadd.s32 %v2399, %v2397
    %vm2401 = vcmp.eq.s32.totalorder %v29, %v2175
    %vm2402 = vcmp.eq.s32.totalorder %v29, %v2190
    %vm2403 = vcmp.eq.s32.totalorder %v29, %v2205
    %vm2404 = vcmp.eq.s32.totalorder %v29, %v2220
    %vm2405 = vcmp.eq.s32.totalorder %v29, %v2235
    %vm2406 = vcmp.eq.s32.totalorder %v29, %v2250
    %vm2407 = vcmp.eq.s32.totalorder %v29, %v2265
    %vm2408 = vcmp.eq.s32.totalorder %v29, %v2280
    %vm2409 = vcmp.eq.s32.totalorder %v29, %v2295
    %vm2410 = vcmp.eq.s32.totalorder %v29, %v2310
    %vm2411 = vcmp.eq.s32.totalorder %v29, %v2325
    %vm2412 = vcmp.eq.s32.totalorder %v29, %v2340
    %vm2413 = vcmp.eq.s32.totalorder %v29, %v2355
    %vm2414 = vcmp.eq.s32.totalorder %v29, %v2370
    %vm2415 = vcmp.eq.s32.totalorder %v29, %v2385
    %vm2416 = vcmp.eq.s32.totalorder %v29, %v2400
    %v2417 = vsel %vm2401, 1, 0
    %v2418 = vsel %vm2402, 1, 0
    %v2419 = vsel %vm2403, 1, 0
    %v2420 = vsel %vm2404, 1, 0
    %v2421 = vsel %vm2405, 1, 0
    %v2422 = vsel %vm2406, 1, 0
    %v2423 = vsel %vm2407, 1, 0
    %v2424 = vsel %vm2408, 1, 0
    %v2425 = vsel %vm2409, 1, 0
    %v2426 = vsel %vm2410, 1, 0
    %v2427 = vsel %vm2411, 1, 0
    %v2428 = vsel %vm2412, 1, 0
    %v2429 = vsel %vm2413, 1, 0
    %v2430 = vsel %vm2414, 1, 0
    %v2431 = vsel %vm2415, 1, 0
    %v2432 = vsel %vm2416, 1, 0
    %v2433 = vcvt.s32.f32 %v2417
    %v2434 = vcvt.s32.f32 %v2418
    %v2435 = vcvt.s32.f32 %v2419
    %v2436 = vcvt.s32.f32 %v2420
    %v2437 = vcvt.s32.f32 %v2421
    %v2438 = vcvt.s32.f32 %v2422
    %v2439 = vcvt.s32.f32 %v2423
    %v2440 = vcvt.s32.f32 %v2424
    %v2441 = vcvt.s32.f32 %v2425
    %v2442 = vcvt.s32.f32 %v2426
    %v2443 = vcvt.s32.f32 %v2427
    %v2444 = vcvt.s32.f32 %v2428
    %v2445 = vcvt.s32.f32 %v2429
    %v2446 = vcvt.s32.f32 %v2430
    %v2447 = vcvt.s32.f32 %v2431
    %v2448 = vcvt.s32.f32 %v2432
    %v2450 = vsel %vm266, %v2433, 0
    %v2453 = vsel %vm266, %v2434, 0
    %v2456 = vsel %vm266, %v2435, 0
    %v2459 = vsel %vm266, %v2436, 0
    %v2462 = vsel %vm266, %v2437, 0
    %v2465 = vsel %vm266, %v2438, 0
    %v2468 = vsel %vm266, %v2439, 0
    %v2471 = vsel %vm266, %v2440, 0
    %v2474 = vsel %vm266, %v2441, 0
    %v2477 = vsel %vm266, %v2442, 0
    %v2480 = vsel %vm266, %v2443, 0
    %v2483 = vsel %vm266, %v2444, 0
    %v2486 = vsel %vm266, %v2445, 0
    %v2489 = vsel %vm266, %v2446, 0
    %v2492 = vsel %vm266, %v2447, 0
    %v2495 = vsel %vm266, %v2448, 0
    %2497 = vmatprep.subr.mxu0 0.0
    %2498 = vmatpush1.msra.mxu0 %v23
    %2499 = vmatprep.subr.mxu0 0.0
    %2500 = vmatpush1.msra.mxu0 %v24
    %2501 = vmatprep.subr.mxu0 0.0
    %2502 = vmatpush1.msra.mxu0 0.0
    %2503 = vmatprep.subr.mxu0 0.0
    %2504 = vmatpush1.msra.mxu0 0.0
    %2505 = vmatprep.subr.mxu0 0.0
    %2506 = vmatpush1.msra.mxu0 0.0
    %2507 = vmatprep.subr.mxu0 0.0
    %2508 = vmatpush1.msra.mxu0 0.0
    %2509 = vmatprep.subr.mxu0 0.0
    %2510 = vmatpush1.msra.mxu0 0.0
    %2511 = vmatprep.subr.mxu0 0.0
    %2512 = vmatpush1.msra.mxu0 0.0
    %2513 = vmatprep.subr.mxu0 0.0
    %2514 = vmatpush1.msra.mxu0 0.0
    %2515 = vmatprep.subr.mxu0 0.0
    %2516 = vmatpush1.msra.mxu0 0.0
    %2517 = vmatprep.subr.mxu0 0.0
    %2518 = vmatpush1.msra.mxu0 0.0
    %2519 = vmatprep.subr.mxu0 0.0
    %2520 = vmatpush1.msra.mxu0 0.0
    %2521 = vmatprep.subr.mxu0 0.0
    %2522 = vmatpush1.msra.mxu0 0.0
    %2523 = vmatprep.subr.mxu0 0.0
    %2524 = vmatpush1.msra.mxu0 0.0
    %2525 = vmatprep.subr.mxu0 0.0
    %2526 = vmatpush1.msra.mxu0 0.0
    %2527 = vmatprep.subr.mxu0 0.0
    %2528 = vmatpush1.msra.mxu0 0.0
    %2529 = vmatprep.subr.mxu0 0.0
    %2530 = vmatpush1.msra.mxu0 0.0
    %2531 = vmatprep.subr.mxu0 0.0
    %2532 = vmatpush1.msra.mxu0 0.0
    %2533 = vmatprep.subr.mxu0 0.0
    %2534 = vmatpush1.msra.mxu0 0.0
    %2535 = vmatprep.subr.mxu0 0.0
    %2536 = vmatpush1.msra.mxu0 0.0
    %2537 = vmatprep.subr.mxu0 0.0
    %2538 = vmatpush1.msra.mxu0 0.0
    %2539 = vmatprep.subr.mxu0 0.0
    %2540 = vmatpush1.msra.mxu0 0.0
    %2541 = vmatprep.subr.mxu0 0.0
    %2542 = vmatpush1.msra.mxu0 0.0
    %2543 = vmatprep.subr.mxu0 0.0
    %2544 = vmatpush1.msra.mxu0 0.0
    %2545 = vmatprep.subr.mxu0 0.0
    %2546 = vmatpush1.msra.mxu0 0.0
    %2547 = vmatprep.subr.mxu0 0.0
    %2548 = vmatpush1.msra.mxu0 0.0
    %2549 = vmatprep.subr.mxu0 0.0
    %2550 = vmatpush1.msra.mxu0 0.0
    %2551 = vmatprep.subr.mxu0 0.0
    %2552 = vmatpush1.msra.mxu0 0.0
    %2553 = vmatprep.subr.mxu0 0.0
    %2554 = vmatpush1.msra.mxu0 0.0
    %2555 = vmatprep.subr.mxu0 0.0
    %2556 = vmatpush1.msra.mxu0 0.0
    %2557 = vmatprep.subr.mxu0 0.0
    %2558 = vmatpush1.msra.mxu0 0.0
    %2559 = vmatprep.subr.mxu0 0.0
    %2560 = vmatpush1.msra.mxu0 0.0
    %2561 = vmatprep.mubr.f32.mxu0 0.0
    %2562 = vmatmul.mubr.f32.gmra.mrb[0].mxu0 %v2450
    %v2563 = vpop.f32.mrb[0].mxu0
    %v2564 = vadd.f32 0.0, %v2563
    %v2565 = vpop.f32.mrb[0].mxu0
    %2566 = vmatprep.mubr.f32.mxu0 0.0
    %2567 = vmatmul.mubr.f32.gmra.mrb[0].mxu0 %v2453
    %v2568 = vpop.f32.mrb[0].mxu0
    %v2569 = vadd.f32 0.0, %v2568
    %v2570 = vpop.f32.mrb[0].mxu0
    %2571 = vmatprep.mubr.f32.mxu0 0.0
    %2572 = vmatmul.mubr.f32.gmra.mrb[0].mxu0 %v2456
    %v2573 = vpop.f32.mrb[0].mxu0
    %v2574 = vadd.f32 0.0, %v2573
    %v2575 = vpop.f32.mrb[0].mxu0
    %2576 = vmatprep.mubr.f32.mxu0 0.0
    %2577 = vmatmul.mubr.f32.gmra.mrb[0].mxu0 %v2459
    %v2578 = vpop.f32.mrb[0].mxu0
    %v2579 = vadd.f32 0.0, %v2578
    %v2580 = vpop.f32.mrb[0].mxu0
    %2581 = vmatprep.mubr.f32.mxu0 0.0
    %2582 = vmatmul.mubr.f32.gmra.mrb[0].mxu0 %v2462
    %v2583 = vpop.f32.mrb[0].mxu0
    %v2584 = vadd.f32 0.0, %v2583
    %v2585 = vpop.f32.mrb[0].mxu0
    %2586 = vmatprep.mubr.f32.mxu0 0.0
    %2587 = vmatmul.mubr.f32.gmra.mrb[0].mxu0 %v2465
    %v2588 = vpop.f32.mrb[0].mxu0
    %v2589 = vadd.f32 0.0, %v2588
    %v2590 = vpop.f32.mrb[0].mxu0
    %2591 = vmatprep.mubr.f32.mxu0 0.0
    %2592 = vmatmul.mubr.f32.gmra.mrb[0].mxu0 %v2468
    %v2593 = vpop.f32.mrb[0].mxu0
    %v2594 = vadd.f32 0.0, %v2593
    %v2595 = vpop.f32.mrb[0].mxu0
    %2596 = vmatprep.mubr.f32.mxu0 0.0
    %2597 = vmatmul.mubr.f32.gmra.mrb[0].mxu0 %v2471
    %v2598 = vpop.f32.mrb[0].mxu0
    %v2599 = vadd.f32 0.0, %v2598
    %v2600 = vpop.f32.mrb[0].mxu0
    %2601 = vmatprep.mubr.f32.mxu0 0.0
    %2602 = vmatmul.mubr.f32.gmra.mrb[0].mxu0 %v2474
    %v2603 = vpop.f32.mrb[0].mxu0
    %v2604 = vadd.f32 0.0, %v2603
    %v2605 = vpop.f32.mrb[0].mxu0
    %2606 = vmatprep.mubr.f32.mxu0 0.0
    %2607 = vmatmul.mubr.f32.gmra.mrb[0].mxu0 %v2477
    %v2608 = vpop.f32.mrb[0].mxu0
    %v2609 = vadd.f32 0.0, %v2608
    %v2610 = vpop.f32.mrb[0].mxu0
    %2611 = vmatprep.mubr.f32.mxu0 0.0
    %2612 = vmatmul.mubr.f32.gmra.mrb[0].mxu0 %v2480
    %v2613 = vpop.f32.mrb[0].mxu0
    %v2614 = vadd.f32 0.0, %v2613
    %v2615 = vpop.f32.mrb[0].mxu0
    %2616 = vmatprep.mubr.f32.mxu0 0.0
    %2617 = vmatmul.mubr.f32.gmra.mrb[0].mxu0 %v2483
    %v2618 = vpop.f32.mrb[0].mxu0
    %v2619 = vadd.f32 0.0, %v2618
    %v2620 = vpop.f32.mrb[0].mxu0
    %2621 = vmatprep.mubr.f32.mxu0 0.0
    %2622 = vmatmul.mubr.f32.gmra.mrb[0].mxu0 %v2486
    %v2623 = vpop.f32.mrb[0].mxu0
    %v2624 = vadd.f32 0.0, %v2623
    %v2625 = vpop.f32.mrb[0].mxu0
    %2626 = vmatprep.mubr.f32.mxu0 0.0
    %2627 = vmatmul.mubr.f32.gmra.mrb[0].mxu0 %v2489
    %v2628 = vpop.f32.mrb[0].mxu0
    %v2629 = vadd.f32 0.0, %v2628
    %v2630 = vpop.f32.mrb[0].mxu0
    %2631 = vmatprep.mubr.f32.mxu0 0.0
    %2632 = vmatmul.mubr.f32.gmra.mrb[0].mxu0 %v2492
    %v2633 = vpop.f32.mrb[0].mxu0
    %v2634 = vadd.f32 0.0, %v2633
    %v2635 = vpop.f32.mrb[0].mxu0
    %2636 = vmatprep.mubr.f32.mxu0 0.0
    %2637 = vmatmul.mubr.f32.gmra.mrb[0].mxu0 %v2495
    %v2638 = vpop.f32.mrb[0].mxu0
    %v2639 = vadd.f32 0.0, %v2638
    %v2640 = vpop.f32.mrb[0].mxu0
    %2641 = vdwg.mxu0
    %v2642 = vadd.f32 %v1750, %v2564
    %v2643 = vadd.f32 %v1751, %v2569
    %v2644 = vadd.f32 %v1752, %v2574
    %v2645 = vadd.f32 %v1753, %v2579
    %v2646 = vadd.f32 %v1754, %v2584
    %v2647 = vadd.f32 %v1755, %v2589
    %v2648 = vadd.f32 %v1756, %v2594
    %v2649 = vadd.f32 %v1757, %v2599
    %v2650 = vadd.f32 %v1758, %v2604
    %v2651 = vadd.f32 %v1759, %v2609
    %v2652 = vadd.f32 %v1760, %v2614
    %v2653 = vadd.f32 %v1761, %v2619
    %v2654 = vadd.f32 %v1762, %v2624
    %v2655 = vadd.f32 %v1763, %v2629
    %v2656 = vadd.f32 %v1764, %v2634
    %v2657 = vadd.f32 %v1765, %v2639
    %v2658 = vlaneseq
    %v2659 = vshrl.u32 %v2658, 7
    %v2660 = vsub.s32 %v29, %v2659
    %v2661 = vrot.slane %v2175, %v2660
    %v2662 = vlaneseq
    %v2663 = vshrl.u32 %v2662, 7
    %v2664 = vsub.s32 %v864, %v2663
    %v2665 = vrot.slane %v2190, %v2664
    %v2666 = vsel %vm869, %v2665, %v2661
    %v2667 = vlaneseq
    %v2668 = vshrl.u32 %v2667, 7
    %v2669 = vsub.s32 %v871, %v2668
    %v2670 = vrot.slane %v2205, %v2669
    %v2671 = vsel %vm876, %v2670, %v2666
    %v2672 = vlaneseq
    %v2673 = vshrl.u32 %v2672, 7
    %v2674 = vsub.s32 %v878, %v2673
    %v2675 = vrot.slane %v2220, %v2674
    %v2676 = vsel %vm883, %v2675, %v2671
    %v2677 = vlaneseq
    %v2678 = vshrl.u32 %v2677, 7
    %v2679 = vsub.s32 %v885, %v2678
    %v2680 = vrot.slane %v2235, %v2679
    %v2681 = vsel %vm890, %v2680, %v2676
    %v2682 = vlaneseq
    %v2683 = vshrl.u32 %v2682, 7
    %v2684 = vsub.s32 %v892, %v2683
    %v2685 = vrot.slane %v2250, %v2684
    %v2686 = vsel %vm897, %v2685, %v2681
    %v2687 = vlaneseq
    %v2688 = vshrl.u32 %v2687, 7
    %v2689 = vsub.s32 %v899, %v2688
    %v2690 = vrot.slane %v2265, %v2689
    %v2691 = vsel %vm904, %v2690, %v2686
    %v2692 = vlaneseq
    %v2693 = vshrl.u32 %v2692, 7
    %v2694 = vsub.s32 %v906, %v2693
    %v2695 = vrot.slane %v2280, %v2694
    %v2696 = vsel %vm911, %v2695, %v2691
    %v2697 = vlaneseq
    %v2698 = vshrl.u32 %v2697, 7
    %v2699 = vsub.s32 %v913, %v2698
    %v2700 = vrot.slane %v2295, %v2699
    %v2701 = vsel %vm918, %v2700, %v2696
    %v2702 = vlaneseq
    %v2703 = vshrl.u32 %v2702, 7
    %v2704 = vsub.s32 %v920, %v2703
    %v2705 = vrot.slane %v2310, %v2704
    %v2706 = vsel %vm925, %v2705, %v2701
    %v2707 = vlaneseq
    %v2708 = vshrl.u32 %v2707, 7
    %v2709 = vsub.s32 %v927, %v2708
    %v2710 = vrot.slane %v2325, %v2709
    %v2711 = vsel %vm932, %v2710, %v2706
    %v2712 = vlaneseq
    %v2713 = vshrl.u32 %v2712, 7
    %v2714 = vsub.s32 %v934, %v2713
    %v2715 = vrot.slane %v2340, %v2714
    %v2716 = vsel %vm939, %v2715, %v2711
    %v2717 = vlaneseq
    %v2718 = vshrl.u32 %v2717, 7
    %v2719 = vsub.s32 %v941, %v2718
    %v2720 = vrot.slane %v2355, %v2719
    %v2721 = vsel %vm946, %v2720, %v2716
    %v2722 = vlaneseq
    %v2723 = vshrl.u32 %v2722, 7
    %v2724 = vsub.s32 %v948, %v2723
    %v2725 = vrot.slane %v2370, %v2724
    %v2726 = vsel %vm953, %v2725, %v2721
    %v2727 = vlaneseq
    %v2728 = vshrl.u32 %v2727, 7
    %v2729 = vsub.s32 %v955, %v2728
    %v2730 = vrot.slane %v2385, %v2729
    %v2731 = vsel %vm960, %v2730, %v2726
    %v2732 = vlaneseq
    %v2733 = vshrl.u32 %v2732, 7
    %v2734 = vsub.s32 %v962, %v2733
    %v2735 = vrot.slane %v2400, %v2734
    %v2736 = vsel %vm967, %v2735, %v2731
    %2737 = vst [vmem:[#allocation2 + $0x2] sm:$0x1] %v2736
    %2738 = vst.msk [vmem:[%s3] sm:$0xff] %vm46, %v2642
    %2739 = vst.msk [vmem:[%s3 + $0x8] sm:$0xff] %vm46, %v2643
    %2740 = vst.msk [vmem:[%s3 + $0x10] sm:$0xff] %vm46, %v2644
    %2741 = vst.msk [vmem:[%s3 + $0x18] sm:$0xff] %vm46, %v2645
    %2742 = vst.msk [vmem:[%s3 + $0x20] sm:$0xff] %vm46, %v2646
    %2743 = vst.msk [vmem:[%s3 + $0x28] sm:$0xff] %vm46, %v2647
    %2744 = vst.msk [vmem:[%s3 + $0x30] sm:$0xff] %vm46, %v2648
    %2745 = vst.msk [vmem:[%s3 + $0x38] sm:$0xff] %vm46, %v2649
    %2746 = vst.msk [vmem:[%s3 + $0x40] sm:$0xff] %vm46, %v2650
    %2747 = vst.msk [vmem:[%s3 + $0x48] sm:$0xff] %vm46, %v2651
    %2748 = vst.msk [vmem:[%s3 + $0x50] sm:$0xff] %vm46, %v2652
    %2749 = vst.msk [vmem:[%s3 + $0x58] sm:$0xff] %vm46, %v2653
    %2750 = vst.msk [vmem:[%s3 + $0x60] sm:$0xff] %vm46, %v2654
    %2751 = vst.msk [vmem:[%s3 + $0x68] sm:$0xff] %vm46, %v2655
    %2752 = vst.msk [vmem:[%s3 + $0x70] sm:$0xff] %vm46, %v2656
    %2753 = vst.msk [vmem:[%s3 + $0x78] sm:$0xff] %vm46, %v2657
    // Predicated region
    $region14: #{rvq_forward_pallas.1} parent=1 // pred_check
      _
    $region15: #{rvq_forward_pallas.1} parent=1 // pred_check_branch
      %2755 = sbr.rel (0) target = $region17
    $region16: #{rvq_forward_pallas.1} parent=1 // pred_region
      _
    $region17: #{rvq_forward_pallas.1} parent=1 // pred_fallthru
      _
    // Predicated region
    $region18: #{rvq_forward_pallas.1} parent=1 // pred_check
      _
    $region19: #{rvq_forward_pallas.1} parent=1 // pred_check_branch
      %2757 = sbr.rel (0) target = $region21
    $region20: #{rvq_forward_pallas.1} parent=1 // pred_region
      %s2759 = ssub.s32 64, 64
      %2760 = vsyncadd [#allocation3], %s2759
      %s2762 = sshll.u32 [#allocation2], 4
      %s2763 = int_to_ptr.vmem [resolvable:$true] %s2762
      %2765 = dma.vmem_to_hbm [thread:$0]  %s2763, 64, %s4, [#allocation3]
    $region21: #{rvq_forward_pallas.1} parent=1 // pred_fallthru
      _
    // Predicated region
    $region22: #{rvq_forward_pallas.1} parent=1 // pred_check
      _
    $region23: #{rvq_forward_pallas.1} parent=1 // pred_check_branch
      %2767 = sbr.rel (0) target = $region25
    $region24: #{rvq_forward_pallas.1} parent=1 // pred_region
      _
    $region25: #{rvq_forward_pallas.1} parent=1 // pred_fallthru
      _
    // Predicated region
    $region26: #{rvq_forward_pallas.1} parent=1 // pred_check
      _
    $region27: #{rvq_forward_pallas.1} parent=1 // pred_check_branch
      %2769 = sbr.rel (0) target = $region29
    $region28: #{rvq_forward_pallas.1} parent=1 // pred_region
      %2770 = dma.done [#allocation3], 64
    $region29: #{rvq_forward_pallas.1} parent=1 // pred_fallthru
      _
    %2771 = vsyncpa [#allocation3], 1

</llo_original>
